<compile_context>
chip_gen: v6e
topology: v6e:2x2x1
jax: 0.10.0
libtpu: 0.0.40
codegen_flags: <defaults>
</compile_context>

<pallas_src>
import functools

import jax
import jax.numpy as jnp
from jax.experimental import pallas as pl
from jax.experimental.pallas import tpu as pltpu

# ----------------------------- small test dimensions -----------------------------
B = 2            # batch
LQ = 8           # len_q
LK = 8           # len_k == len_v
D_MODEL = 32     # d_model
HEADS = 8        # n_heads
DK = 16          # d_k
DV = 16          # d_v   (HEADS*DK = HEADS*DV = 128 = one lane width)


# ================================ Pallas kernel ================================

def _cattn_kernel(q_ref, k_ref, v_ref,
                  wq_ref, bq_ref, wk_ref, bk_ref, wv_ref, bv_ref,
                  wfc_ref, bfc_ref, o_ref, *, n_heads, d_k, d_v):
    """One batch element per grid step.  q_ref: (Lq, d_model) bf16, weights bf16,
    biases f32 (scale for W_Q/b_Q already folded in by the wrapper)."""
    f32 = jnp.float32
    bf16 = jnp.bfloat16

    # ---- input projections: bf16 operands, f32 accumulation on the MXU ----
    Q = jnp.dot(q_ref[...], wq_ref[...], preferred_element_type=f32) + bq_ref[...]  # (Lq, H*dk)
    K = jnp.dot(k_ref[...], wk_ref[...], preferred_element_type=f32) + bk_ref[...]  # (Lk, H*dk)
    V = jnp.dot(v_ref[...], wv_ref[...], preferred_element_type=f32) + bv_ref[...]  # (Lk, H*dv)

    Qb = Q.astype(bf16)
    Kb = K.astype(bf16)
    Vb = V.astype(bf16)

    # ---- per-head attention: statically-unrolled loop of MXU matmuls ----
    ctx_heads = []
    for h in range(n_heads):                       # n_heads is a compile-time constant
        qh = Qb[:, h * d_k:(h + 1) * d_k]          # (Lq, dk)  static lane slice
        kh = Kb[:, h * d_k:(h + 1) * d_k]          # (Lk, dk)
        vh = Vb[:, h * d_v:(h + 1) * d_v]          # (Lk, dv)

        # scores_h = Q_h @ K_h^T  (scale already folded into W_Q); Lk lands in lanes.
        s = jax.lax.dot_general(qh, kh, (((1,), (1,)), ((), ())),
                                preferred_element_type=f32)        # (Lq, Lk) f32

        # numerically-stable softmax over the key (lane) axis, f32 VPU/EUP math
        s = s - jnp.max(s, axis=-1, keepdims=True)
        p = jnp.exp(s)                                             # unnormalized probs
        inv_l = pl.reciprocal(jnp.sum(p, axis=-1, keepdims=True), approx=True)  # (Lq, 1)

        # context_h = softmax(P) @ V_h ; normalize after the contraction (fewer VALU ops)
        ch = jnp.dot(p.astype(bf16), vh, preferred_element_type=f32) * inv_l   # (Lq, dv)
        ctx_heads.append(ch)

    ctx = jnp.concatenate(ctx_heads, axis=-1)                      # (Lq, H*dv) == head-major layout

    # ---- output projection (fc); dropout(0.2) is identity at inference ----
    out = jnp.dot(ctx.astype(bf16), wfc_ref[...],
                  preferred_element_type=f32) + bfc_ref[...]       # (Lq, d_model)
    o_ref[...] = out.astype(o_ref.dtype)


def cattention(input_q, input_k, input_v, params, *, n_heads=HEADS, d_k=DK, d_v=DV):
    b, lq, d_model = input_q.shape
    lk = input_k.shape[1]
    bf16 = jnp.bfloat16
    scale = float(d_k) ** -0.5

    # Fold the 1/sqrt(d_k) score scale into W_Q / b_Q; cast matmul operands to bf16
    # (MXU-native), keep biases f32 (added to the f32 accumulator).
    wq = (params["wq"] * scale).astype(bf16)
    bq = params["bq"] * scale
    wk = params["wk"].astype(bf16)
    bk = params["bk"]
    wv = params["wv"].astype(bf16)
    bv = params["bv"]
    wfc = params["wfc"].astype(bf16)
    bfc = params["bfc"]
    qb = input_q.astype(bf16)
    kb = input_k.astype(bf16)
    vb = input_v.astype(bf16)

    kern = functools.partial(_cattn_kernel, n_heads=n_heads, d_k=d_k, d_v=d_v)

    def _full(shape):
        # whole-array block, resident in VMEM across all grid steps (constant index_map)
        return pl.BlockSpec(shape, lambda bb: (0,) * len(shape))

    return pl.pallas_call(
        kern,
        grid=(b,),
        in_specs=[
            pl.BlockSpec((None, lq, d_model), lambda bb: (bb, 0, 0)),   # input_Q
            pl.BlockSpec((None, lk, d_model), lambda bb: (bb, 0, 0)),   # input_K
            pl.BlockSpec((None, lk, d_model), lambda bb: (bb, 0, 0)),   # input_V
            _full((d_model, n_heads * d_k)), _full((1, n_heads * d_k)),  # W_Q, b_Q
            _full((d_model, n_heads * d_k)), _full((1, n_heads * d_k)),  # W_K, b_K
            _full((d_model, n_heads * d_v)), _full((1, n_heads * d_v)),  # W_V, b_V
            _full((n_heads * d_v, d_model)), _full((1, d_model)),        # fc
        ],
        out_specs=pl.BlockSpec((None, lq, d_model), lambda bb: (bb, 0, 0)),
        out_shape=jax.ShapeDtypeStruct((b, lq, d_model), jnp.float32),
        compiler_params=pltpu.CompilerParams(
            dimension_semantics=("parallel",),        # batch axis sharded across TCs on v7x
            vmem_limit_bytes=32 * 1024 * 1024),
    )(qb, kb, vb, wq, bq, wk, bk, wv, bv, wfc, bfc)


# ================================ reference & params ================================

def cattention_ref(input_q, input_k, input_v, params, *, n_heads=HEADS, d_k=DK, d_v=DV):
    """Pure-JAX f32 reference mirroring the PyTorch view/transpose order exactly."""
    hi = jax.lax.Precision.HIGHEST
    b, lq, d_model = input_q.shape
    lk = input_k.shape[1]
    Q = (jnp.dot(input_q.reshape(b * lq, d_model), params["wq"], precision=hi)
         + params["bq"]).reshape(b, lq, n_heads, d_k).transpose(0, 2, 1, 3)
    K = (jnp.dot(input_k.reshape(b * lk, d_model), params["wk"], precision=hi)
         + params["bk"]).reshape(b, lk, n_heads, d_k).transpose(0, 2, 1, 3)
    V = (jnp.dot(input_v.reshape(b * lk, d_model), params["wv"], precision=hi)
         + params["bv"]).reshape(b, lk, n_heads, d_v).transpose(0, 2, 1, 3)
    scores = jnp.einsum('bhqd,bhkd->bhqk', Q, K, precision=hi) / jnp.sqrt(jnp.float32(d_k))
    attn = jax.nn.softmax(scores, axis=-1)
    ctx = jnp.einsum('bhqk,bhkd->bhqd', attn, V, precision=hi)
    ctx = ctx.transpose(0, 2, 1, 3).reshape(b, lq, n_heads * d_v)
    return jnp.dot(ctx.reshape(b * lq, n_heads * d_v), params["wfc"],
                   precision=hi).reshape(b, lq, d_model) + params["bfc"]


def init_params(key):
    ks = jax.random.split(key, 8)
    n = lambda k, shape, s=0.1: s * jax.random.normal(k, shape, jnp.float32)
    # nn.Linear(d_model, H*dk) etc.; weights stored pre-transposed as (in, out).
    return dict(
        wq=n(ks[0], (D_MODEL, HEADS * DK)), bq=n(ks[1], (1, HEADS * DK)),
        wk=n(ks[2], (D_MODEL, HEADS * DK)), bk=n(ks[3], (1, HEADS * DK)),
        wv=n(ks[4], (D_MODEL, HEADS * DV)), bv=n(ks[5], (1, HEADS * DV)),
        wfc=n(ks[6], (HEADS * DV, D_MODEL)), bfc=n(ks[7], (1, D_MODEL)),
    )


# ================================ driver ================================

if __name__ == "__main__":
    key = jax.random.PRNGKey(0)
    kq, kk, kv, kw = jax.random.split(key, 4)
    input_Q = jax.random.normal(kq, (B, LQ, D_MODEL), jnp.float32)
    input_K = jax.random.normal(kk, (B, LK, D_MODEL), jnp.float32)
    input_V = jax.random.normal(kv, (B, LK, D_MODEL), jnp.float32)
    params = init_params(kw)

    fwd = jax.jit(cattention)
    out = jax.block_until_ready(fwd(input_Q, input_K, input_V, params))

    ref = cattention_ref(input_Q, input_K, input_V, params)

    assert out.shape == (B, LQ, D_MODEL)
    assert bool(jnp.all(jnp.isfinite(out)))
    # Tolerance widened vs the pure-f32 version because matmul operands are bf16
    # (f32 accumulation); observed error is well inside this bound at these magnitudes.
    max_err = float(jnp.max(jnp.abs(out - ref)))
    assert max_err < 5e-2, f"mismatch vs reference: max abs err = {max_err}"
    # TODO(synk): nn.Dropout(0.2) is treated as identity (inference); no RNG path.
    print("KERNEL_OK")
</pallas_src>

<mosaic_0001>
module attributes {stable_mosaic.version = 11 : i64} {
  func.func @_cattn_kernel(%arg0: i32, %arg1: memref<1x8x32xbf16, #tpu.memory_space<vmem>>, %arg2: memref<1x8x32xbf16, #tpu.memory_space<vmem>>, %arg3: memref<1x8x32xbf16, #tpu.memory_space<vmem>>, %arg4: memref<32x128xbf16, #tpu.memory_space<vmem>>, %arg5: memref<1x128xf32, #tpu.memory_space<vmem>>, %arg6: memref<32x128xbf16, #tpu.memory_space<vmem>>, %arg7: memref<1x128xf32, #tpu.memory_space<vmem>>, %arg8: memref<32x128xbf16, #tpu.memory_space<vmem>>, %arg9: memref<1x128xf32, #tpu.memory_space<vmem>>, %arg10: memref<128x32xbf16, #tpu.memory_space<vmem>>, %arg11: memref<1x32xf32, #tpu.memory_space<vmem>>, %arg12: memref<1x8x32xf32, #tpu.memory_space<vmem>>) attributes {dimension_semantics = [#tpu.dimension_semantics<parallel>], iteration_bounds = array<i64: 2>, scalar_prefetch = 0 : i64, scratch_operands = 0 : i64, tpu.core_type = #tpu.core_type<tc>, window_params = [{transform_indices = @transform_0, window_bounds = array<i64: 1, 8, 32>}, {transform_indices = @transform_1, window_bounds = array<i64: 1, 8, 32>}, {transform_indices = @transform_2, window_bounds = array<i64: 1, 8, 32>}, {pipeline_mode = #tpu.pipeline_mode<synchronous>, transform_indices = @transform_3, window_bounds = array<i64: 32, 128>}, {pipeline_mode = #tpu.pipeline_mode<synchronous>, transform_indices = @transform_4, window_bounds = array<i64: 1, 128>}, {pipeline_mode = #tpu.pipeline_mode<synchronous>, transform_indices = @transform_5, window_bounds = array<i64: 32, 128>}, {pipeline_mode = #tpu.pipeline_mode<synchronous>, transform_indices = @transform_6, window_bounds = array<i64: 1, 128>}, {pipeline_mode = #tpu.pipeline_mode<synchronous>, transform_indices = @transform_7, window_bounds = array<i64: 32, 128>}, {pipeline_mode = #tpu.pipeline_mode<synchronous>, transform_indices = @transform_8, window_bounds = array<i64: 1, 128>}, {pipeline_mode = #tpu.pipeline_mode<synchronous>, transform_indices = @transform_9, window_bounds = array<i64: 128, 32>}, {pipeline_mode = #tpu.pipeline_mode<synchronous>, transform_indices = @transform_10, window_bounds = array<i64: 1, 32>}, {transform_indices = @transform_11, window_bounds = array<i64: 1, 8, 32>}]} {
    %c0 = arith.constant 0 : index
    %c0_0 = arith.constant 0 : index
    %c0_1 = arith.constant 0 : index
    %0 = vector.load %arg1[%c0, %c0_0, %c0_1] : memref<1x8x32xbf16, #tpu.memory_space<vmem>>, vector<1x8x32xbf16>
    %1 = vector.shape_cast %0 : vector<1x8x32xbf16> to vector<8x32xbf16>
    %c0_2 = arith.constant 0 : index
    %c0_3 = arith.constant 0 : index
    %2 = vector.load %arg4[%c0_2, %c0_3] : memref<32x128xbf16, #tpu.memory_space<vmem>>, vector<32x128xbf16>
    %cst = arith.constant dense<0.000000e+00> : vector<8x128xf32>
    %3 = tpu.matmul %1, %2, %cst {dimension_numbers = #tpu.dot_dimension_numbers<[1], [0], [0], [1], [0, 0, 1, 1], [], []>} : vector<8x32xbf16>, vector<32x128xbf16>, vector<8x128xf32> -> vector<8x128xf32>
    %c0_4 = arith.constant 0 : index
    %c0_5 = arith.constant 0 : index
    %4 = vector.load %arg5[%c0_4, %c0_5] : memref<1x128xf32, #tpu.memory_space<vmem>>, vector<1x128xf32>
    %5 = vector.broadcast %4 : vector<1x128xf32> to vector<8x128xf32>
    %6 = arith.addf %3, %5 : vector<8x128xf32>
    %c0_6 = arith.constant 0 : index
    %c0_7 = arith.constant 0 : index
    %c0_8 = arith.constant 0 : index
    %7 = vector.load %arg2[%c0_6, %c0_7, %c0_8] : memref<1x8x32xbf16, #tpu.memory_space<vmem>>, vector<1x8x32xbf16>
    %8 = vector.shape_cast %7 : vector<1x8x32xbf16> to vector<8x32xbf16>
    %c0_9 = arith.constant 0 : index
    %c0_10 = arith.constant 0 : index
    %9 = vector.load %arg6[%c0_9, %c0_10] : memref<32x128xbf16, #tpu.memory_space<vmem>>, vector<32x128xbf16>
    %cst_11 = arith.constant dense<0.000000e+00> : vector<8x128xf32>
    %10 = tpu.matmul %8, %9, %cst_11 {dimension_numbers = #tpu.dot_dimension_numbers<[1], [0], [0], [1], [0, 0, 1, 1], [], []>} : vector<8x32xbf16>, vector<32x128xbf16>, vector<8x128xf32> -> vector<8x128xf32>
    %c0_12 = arith.constant 0 : index
    %c0_13 = arith.constant 0 : index
    %11 = vector.load %arg7[%c0_12, %c0_13] : memref<1x128xf32, #tpu.memory_space<vmem>>, vector<1x128xf32>
    %12 = vector.broadcast %11 : vector<1x128xf32> to vector<8x128xf32>
    %13 = arith.addf %10, %12 : vector<8x128xf32>
    %c0_14 = arith.constant 0 : index
    %c0_15 = arith.constant 0 : index
    %c0_16 = arith.constant 0 : index
    %14 = vector.load %arg3[%c0_14, %c0_15, %c0_16] : memref<1x8x32xbf16, #tpu.memory_space<vmem>>, vector<1x8x32xbf16>
    %15 = vector.shape_cast %14 : vector<1x8x32xbf16> to vector<8x32xbf16>
    %c0_17 = arith.constant 0 : index
    %c0_18 = arith.constant 0 : index
    %16 = vector.load %arg8[%c0_17, %c0_18] : memref<32x128xbf16, #tpu.memory_space<vmem>>, vector<32x128xbf16>
    %cst_19 = arith.constant dense<0.000000e+00> : vector<8x128xf32>
    %17 = tpu.matmul %15, %16, %cst_19 {dimension_numbers = #tpu.dot_dimension_numbers<[1], [0], [0], [1], [0, 0, 1, 1], [], []>} : vector<8x32xbf16>, vector<32x128xbf16>, vector<8x128xf32> -> vector<8x128xf32>
    %c0_20 = arith.constant 0 : index
    %c0_21 = arith.constant 0 : index
    %18 = vector.load %arg9[%c0_20, %c0_21] : memref<1x128xf32, #tpu.memory_space<vmem>>, vector<1x128xf32>
    %19 = vector.broadcast %18 : vector<1x128xf32> to vector<8x128xf32>
    %20 = arith.addf %17, %19 : vector<8x128xf32>
    %21 = arith.truncf %6 : vector<8x128xf32> to vector<8x128xbf16>
    %22 = arith.truncf %13 : vector<8x128xf32> to vector<8x128xbf16>
    %23 = arith.truncf %20 : vector<8x128xf32> to vector<8x128xbf16>
    %24 = vector.extract_strided_slice %21 {offsets = [0, 0], sizes = [8, 16], strides = [1, 1]} : vector<8x128xbf16> to vector<8x16xbf16>
    %25 = vector.extract_strided_slice %22 {offsets = [0, 0], sizes = [8, 16], strides = [1, 1]} : vector<8x128xbf16> to vector<8x16xbf16>
    %26 = vector.extract_strided_slice %23 {offsets = [0, 0], sizes = [8, 16], strides = [1, 1]} : vector<8x128xbf16> to vector<8x16xbf16>
    %cst_22 = arith.constant dense<0.000000e+00> : vector<8x8xf32>
    %27 = tpu.matmul %24, %25, %cst_22 {dimension_numbers = #tpu.dot_dimension_numbers<[1], [1], [0], [0], [0, 0, 1, 0], [], []>} : vector<8x16xbf16>, vector<8x16xbf16>, vector<8x8xf32> -> vector<8x8xf32>
    %cst_23 = arith.constant dense<0xFF800000> : vector<8xf32>
    %28 = vector.multi_reduction <maximumf>, %27, %cst_23 [1] : vector<8x8xf32> to vector<8xf32>
    %29 = vector.shape_cast %28 : vector<8xf32> to vector<8x1xf32>
    %30 = vector.broadcast %29 : vector<8x1xf32> to vector<8x8xf32>
    %31 = arith.subf %27, %30 : vector<8x8xf32>
    %32 = math.exp %31 : vector<8x8xf32>
    %cst_24 = arith.constant dense<0.000000e+00> : vector<8xf32>
    %33 = vector.multi_reduction <add>, %32, %cst_24 [1] : vector<8x8xf32> to vector<8xf32>
    %34 = vector.shape_cast %33 : vector<8xf32> to vector<8x1xf32>
    %35 = tpu.reciprocal %34 {approx = true} : vector<8x1xf32> -> vector<8x1xf32>
    %36 = arith.truncf %32 : vector<8x8xf32> to vector<8x8xbf16>
    %cst_25 = arith.constant dense<0.000000e+00> : vector<8x16xf32>
    %37 = tpu.matmul %36, %26, %cst_25 {dimension_numbers = #tpu.dot_dimension_numbers<[1], [0], [0], [1], [0, 0, 1, 1], [], []>} : vector<8x8xbf16>, vector<8x16xbf16>, vector<8x16xf32> -> vector<8x16xf32>
    %38 = vector.broadcast %35 : vector<8x1xf32> to vector<8x16xf32>
    %39 = arith.mulf %37, %38 : vector<8x16xf32>
    %40 = vector.extract_strided_slice %21 {offsets = [0, 16], sizes = [8, 16], strides = [1, 1]} : vector<8x128xbf16> to vector<8x16xbf16>
    %41 = vector.extract_strided_slice %22 {offsets = [0, 16], sizes = [8, 16], strides = [1, 1]} : vector<8x128xbf16> to vector<8x16xbf16>
    %42 = vector.extract_strided_slice %23 {offsets = [0, 16], sizes = [8, 16], strides = [1, 1]} : vector<8x128xbf16> to vector<8x16xbf16>
    %cst_26 = arith.constant dense<0.000000e+00> : vector<8x8xf32>
    %43 = tpu.matmul %40, %41, %cst_26 {dimension_numbers = #tpu.dot_dimension_numbers<[1], [1], [0], [0], [0, 0, 1, 0], [], []>} : vector<8x16xbf16>, vector<8x16xbf16>, vector<8x8xf32> -> vector<8x8xf32>
    %cst_27 = arith.constant dense<0xFF800000> : vector<8xf32>
    %44 = vector.multi_reduction <maximumf>, %43, %cst_27 [1] : vector<8x8xf32> to vector<8xf32>
    %45 = vector.shape_cast %44 : vector<8xf32> to vector<8x1xf32>
    %46 = vector.broadcast %45 : vector<8x1xf32> to vector<8x8xf32>
    %47 = arith.subf %43, %46 : vector<8x8xf32>
    %48 = math.exp %47 : vector<8x8xf32>
    %cst_28 = arith.constant dense<0.000000e+00> : vector<8xf32>
    %49 = vector.multi_reduction <add>, %48, %cst_28 [1] : vector<8x8xf32> to vector<8xf32>
    %50 = vector.shape_cast %49 : vector<8xf32> to vector<8x1xf32>
    %51 = tpu.reciprocal %50 {approx = true} : vector<8x1xf32> -> vector<8x1xf32>
    %52 = arith.truncf %48 : vector<8x8xf32> to vector<8x8xbf16>
    %cst_29 = arith.constant dense<0.000000e+00> : vector<8x16xf32>
    %53 = tpu.matmul %52, %42, %cst_29 {dimension_numbers = #tpu.dot_dimension_numbers<[1], [0], [0], [1], [0, 0, 1, 1], [], []>} : vector<8x8xbf16>, vector<8x16xbf16>, vector<8x16xf32> -> vector<8x16xf32>
    %54 = vector.broadcast %51 : vector<8x1xf32> to vector<8x16xf32>
    %55 = arith.mulf %53, %54 : vector<8x16xf32>
    %56 = vector.extract_strided_slice %21 {offsets = [0, 32], sizes = [8, 16], strides = [1, 1]} : vector<8x128xbf16> to vector<8x16xbf16>
    %57 = vector.extract_strided_slice %22 {offsets = [0, 32], sizes = [8, 16], strides = [1, 1]} : vector<8x128xbf16> to vector<8x16xbf16>
    %58 = vector.extract_strided_slice %23 {offsets = [0, 32], sizes = [8, 16], strides = [1, 1]} : vector<8x128xbf16> to vector<8x16xbf16>
    %cst_30 = arith.constant dense<0.000000e+00> : vector<8x8xf32>
    %59 = tpu.matmul %56, %57, %cst_30 {dimension_numbers = #tpu.dot_dimension_numbers<[1], [1], [0], [0], [0, 0, 1, 0], [], []>} : vector<8x16xbf16>, vector<8x16xbf16>, vector<8x8xf32> -> vector<8x8xf32>
    %cst_31 = arith.constant dense<0xFF800000> : vector<8xf32>
    %60 = vector.multi_reduction <maximumf>, %59, %cst_31 [1] : vector<8x8xf32> to vector<8xf32>
    %61 = vector.shape_cast %60 : vector<8xf32> to vector<8x1xf32>
    %62 = vector.broadcast %61 : vector<8x1xf32> to vector<8x8xf32>
    %63 = arith.subf %59, %62 : vector<8x8xf32>
    %64 = math.exp %63 : vector<8x8xf32>
    %cst_32 = arith.constant dense<0.000000e+00> : vector<8xf32>
    %65 = vector.multi_reduction <add>, %64, %cst_32 [1] : vector<8x8xf32> to vector<8xf32>
    %66 = vector.shape_cast %65 : vector<8xf32> to vector<8x1xf32>
    %67 = tpu.reciprocal %66 {approx = true} : vector<8x1xf32> -> vector<8x1xf32>
    %68 = arith.truncf %64 : vector<8x8xf32> to vector<8x8xbf16>
    %cst_33 = arith.constant dense<0.000000e+00> : vector<8x16xf32>
    %69 = tpu.matmul %68, %58, %cst_33 {dimension_numbers = #tpu.dot_dimension_numbers<[1], [0], [0], [1], [0, 0, 1, 1], [], []>} : vector<8x8xbf16>, vector<8x16xbf16>, vector<8x16xf32> -> vector<8x16xf32>
    %70 = vector.broadcast %67 : vector<8x1xf32> to vector<8x16xf32>
    %71 = arith.mulf %69, %70 : vector<8x16xf32>
    %72 = vector.extract_strided_slice %21 {offsets = [0, 48], sizes = [8, 16], strides = [1, 1]} : vector<8x128xbf16> to vector<8x16xbf16>
    %73 = vector.extract_strided_slice %22 {offsets = [0, 48], sizes = [8, 16], strides = [1, 1]} : vector<8x128xbf16> to vector<8x16xbf16>
    %74 = vector.extract_strided_slice %23 {offsets = [0, 48], sizes = [8, 16], strides = [1, 1]} : vector<8x128xbf16> to vector<8x16xbf16>
    %cst_34 = arith.constant dense<0.000000e+00> : vector<8x8xf32>
    %75 = tpu.matmul %72, %73, %cst_34 {dimension_numbers = #tpu.dot_dimension_numbers<[1], [1], [0], [0], [0, 0, 1, 0], [], []>} : vector<8x16xbf16>, vector<8x16xbf16>, vector<8x8xf32> -> vector<8x8xf32>
    %cst_35 = arith.constant dense<0xFF800000> : vector<8xf32>
    %76 = vector.multi_reduction <maximumf>, %75, %cst_35 [1] : vector<8x8xf32> to vector<8xf32>
    %77 = vector.shape_cast %76 : vector<8xf32> to vector<8x1xf32>
    %78 = vector.broadcast %77 : vector<8x1xf32> to vector<8x8xf32>
    %79 = arith.subf %75, %78 : vector<8x8xf32>
    %80 = math.exp %79 : vector<8x8xf32>
    %cst_36 = arith.constant dense<0.000000e+00> : vector<8xf32>
    %81 = vector.multi_reduction <add>, %80, %cst_36 [1] : vector<8x8xf32> to vector<8xf32>
    %82 = vector.shape_cast %81 : vector<8xf32> to vector<8x1xf32>
    %83 = tpu.reciprocal %82 {approx = true} : vector<8x1xf32> -> vector<8x1xf32>
    %84 = arith.truncf %80 : vector<8x8xf32> to vector<8x8xbf16>
    %cst_37 = arith.constant dense<0.000000e+00> : vector<8x16xf32>
    %85 = tpu.matmul %84, %74, %cst_37 {dimension_numbers = #tpu.dot_dimension_numbers<[1], [0], [0], [1], [0, 0, 1, 1], [], []>} : vector<8x8xbf16>, vector<8x16xbf16>, vector<8x16xf32> -> vector<8x16xf32>
    %86 = vector.broadcast %83 : vector<8x1xf32> to vector<8x16xf32>
    %87 = arith.mulf %85, %86 : vector<8x16xf32>
    %88 = vector.extract_strided_slice %21 {offsets = [0, 64], sizes = [8, 16], strides = [1, 1]} : vector<8x128xbf16> to vector<8x16xbf16>
    %89 = vector.extract_strided_slice %22 {offsets = [0, 64], sizes = [8, 16], strides = [1, 1]} : vector<8x128xbf16> to vector<8x16xbf16>
    %90 = vector.extract_strided_slice %23 {offsets = [0, 64], sizes = [8, 16], strides = [1, 1]} : vector<8x128xbf16> to vector<8x16xbf16>
    %cst_38 = arith.constant dense<0.000000e+00> : vector<8x8xf32>
    %91 = tpu.matmul %88, %89, %cst_38 {dimension_numbers = #tpu.dot_dimension_numbers<[1], [1], [0], [0], [0, 0, 1, 0], [], []>} : vector<8x16xbf16>, vector<8x16xbf16>, vector<8x8xf32> -> vector<8x8xf32>
    %cst_39 = arith.constant dense<0xFF800000> : vector<8xf32>
    %92 = vector.multi_reduction <maximumf>, %91, %cst_39 [1] : vector<8x8xf32> to vector<8xf32>
    %93 = vector.shape_cast %92 : vector<8xf32> to vector<8x1xf32>
    %94 = vector.broadcast %93 : vector<8x1xf32> to vector<8x8xf32>
    %95 = arith.subf %91, %94 : vector<8x8xf32>
    %96 = math.exp %95 : vector<8x8xf32>
    %cst_40 = arith.constant dense<0.000000e+00> : vector<8xf32>
    %97 = vector.multi_reduction <add>, %96, %cst_40 [1] : vector<8x8xf32> to vector<8xf32>
    %98 = vector.shape_cast %97 : vector<8xf32> to vector<8x1xf32>
    %99 = tpu.reciprocal %98 {approx = true} : vector<8x1xf32> -> vector<8x1xf32>
    %100 = arith.truncf %96 : vector<8x8xf32> to vector<8x8xbf16>
    %cst_41 = arith.constant dense<0.000000e+00> : vector<8x16xf32>
    %101 = tpu.matmul %100, %90, %cst_41 {dimension_numbers = #tpu.dot_dimension_numbers<[1], [0], [0], [1], [0, 0, 1, 1], [], []>} : vector<8x8xbf16>, vector<8x16xbf16>, vector<8x16xf32> -> vector<8x16xf32>
    %102 = vector.broadcast %99 : vector<8x1xf32> to vector<8x16xf32>
    %103 = arith.mulf %101, %102 : vector<8x16xf32>
    %104 = vector.extract_strided_slice %21 {offsets = [0, 80], sizes = [8, 16], strides = [1, 1]} : vector<8x128xbf16> to vector<8x16xbf16>
    %105 = vector.extract_strided_slice %22 {offsets = [0, 80], sizes = [8, 16], strides = [1, 1]} : vector<8x128xbf16> to vector<8x16xbf16>
    %106 = vector.extract_strided_slice %23 {offsets = [0, 80], sizes = [8, 16], strides = [1, 1]} : vector<8x128xbf16> to vector<8x16xbf16>
    %cst_42 = arith.constant dense<0.000000e+00> : vector<8x8xf32>
    %107 = tpu.matmul %104, %105, %cst_42 {dimension_numbers = #tpu.dot_dimension_numbers<[1], [1], [0], [0], [0, 0, 1, 0], [], []>} : vector<8x16xbf16>, vector<8x16xbf16>, vector<8x8xf32> -> vector<8x8xf32>
    %cst_43 = arith.constant dense<0xFF800000> : vector<8xf32>
    %108 = vector.multi_reduction <maximumf>, %107, %cst_43 [1] : vector<8x8xf32> to vector<8xf32>
    %109 = vector.shape_cast %108 : vector<8xf32> to vector<8x1xf32>
    %110 = vector.broadcast %109 : vector<8x1xf32> to vector<8x8xf32>
    %111 = arith.subf %107, %110 : vector<8x8xf32>
    %112 = math.exp %111 : vector<8x8xf32>
    %cst_44 = arith.constant dense<0.000000e+00> : vector<8xf32>
    %113 = vector.multi_reduction <add>, %112, %cst_44 [1] : vector<8x8xf32> to vector<8xf32>
    %114 = vector.shape_cast %113 : vector<8xf32> to vector<8x1xf32>
    %115 = tpu.reciprocal %114 {approx = true} : vector<8x1xf32> -> vector<8x1xf32>
    %116 = arith.truncf %112 : vector<8x8xf32> to vector<8x8xbf16>
    %cst_45 = arith.constant dense<0.000000e+00> : vector<8x16xf32>
    %117 = tpu.matmul %116, %106, %cst_45 {dimension_numbers = #tpu.dot_dimension_numbers<[1], [0], [0], [1], [0, 0, 1, 1], [], []>} : vector<8x8xbf16>, vector<8x16xbf16>, vector<8x16xf32> -> vector<8x16xf32>
    %118 = vector.broadcast %115 : vector<8x1xf32> to vector<8x16xf32>
    %119 = arith.mulf %117, %118 : vector<8x16xf32>
    %120 = vector.extract_strided_slice %21 {offsets = [0, 96], sizes = [8, 16], strides = [1, 1]} : vector<8x128xbf16> to vector<8x16xbf16>
    %121 = vector.extract_strided_slice %22 {offsets = [0, 96], sizes = [8, 16], strides = [1, 1]} : vector<8x128xbf16> to vector<8x16xbf16>
    %122 = vector.extract_strided_slice %23 {offsets = [0, 96], sizes = [8, 16], strides = [1, 1]} : vector<8x128xbf16> to vector<8x16xbf16>
    %cst_46 = arith.constant dense<0.000000e+00> : vector<8x8xf32>
    %123 = tpu.matmul %120, %121, %cst_46 {dimension_numbers = #tpu.dot_dimension_numbers<[1], [1], [0], [0], [0, 0, 1, 0], [], []>} : vector<8x16xbf16>, vector<8x16xbf16>, vector<8x8xf32> -> vector<8x8xf32>
    %cst_47 = arith.constant dense<0xFF800000> : vector<8xf32>
    %124 = vector.multi_reduction <maximumf>, %123, %cst_47 [1] : vector<8x8xf32> to vector<8xf32>
    %125 = vector.shape_cast %124 : vector<8xf32> to vector<8x1xf32>
    %126 = vector.broadcast %125 : vector<8x1xf32> to vector<8x8xf32>
    %127 = arith.subf %123, %126 : vector<8x8xf32>
    %128 = math.exp %127 : vector<8x8xf32>
    %cst_48 = arith.constant dense<0.000000e+00> : vector<8xf32>
    %129 = vector.multi_reduction <add>, %128, %cst_48 [1] : vector<8x8xf32> to vector<8xf32>
    %130 = vector.shape_cast %129 : vector<8xf32> to vector<8x1xf32>
    %131 = tpu.reciprocal %130 {approx = true} : vector<8x1xf32> -> vector<8x1xf32>
    %132 = arith.truncf %128 : vector<8x8xf32> to vector<8x8xbf16>
    %cst_49 = arith.constant dense<0.000000e+00> : vector<8x16xf32>
    %133 = tpu.matmul %132, %122, %cst_49 {dimension_numbers = #tpu.dot_dimension_numbers<[1], [0], [0], [1], [0, 0, 1, 1], [], []>} : vector<8x8xbf16>, vector<8x16xbf16>, vector<8x16xf32> -> vector<8x16xf32>
    %134 = vector.broadcast %131 : vector<8x1xf32> to vector<8x16xf32>
    %135 = arith.mulf %133, %134 : vector<8x16xf32>
    %136 = vector.extract_strided_slice %21 {offsets = [0, 112], sizes = [8, 16], strides = [1, 1]} : vector<8x128xbf16> to vector<8x16xbf16>
    %137 = vector.extract_strided_slice %22 {offsets = [0, 112], sizes = [8, 16], strides = [1, 1]} : vector<8x128xbf16> to vector<8x16xbf16>
    %138 = vector.extract_strided_slice %23 {offsets = [0, 112], sizes = [8, 16], strides = [1, 1]} : vector<8x128xbf16> to vector<8x16xbf16>
    %cst_50 = arith.constant dense<0.000000e+00> : vector<8x8xf32>
    %139 = tpu.matmul %136, %137, %cst_50 {dimension_numbers = #tpu.dot_dimension_numbers<[1], [1], [0], [0], [0, 0, 1, 0], [], []>} : vector<8x16xbf16>, vector<8x16xbf16>, vector<8x8xf32> -> vector<8x8xf32>
    %cst_51 = arith.constant dense<0xFF800000> : vector<8xf32>
    %140 = vector.multi_reduction <maximumf>, %139, %cst_51 [1] : vector<8x8xf32> to vector<8xf32>
    %141 = vector.shape_cast %140 : vector<8xf32> to vector<8x1xf32>
    %142 = vector.broadcast %141 : vector<8x1xf32> to vector<8x8xf32>
    %143 = arith.subf %139, %142 : vector<8x8xf32>
    %144 = math.exp %143 : vector<8x8xf32>
    %cst_52 = arith.constant dense<0.000000e+00> : vector<8xf32>
    %145 = vector.multi_reduction <add>, %144, %cst_52 [1] : vector<8x8xf32> to vector<8xf32>
    %146 = vector.shape_cast %145 : vector<8xf32> to vector<8x1xf32>
    %147 = tpu.reciprocal %146 {approx = true} : vector<8x1xf32> -> vector<8x1xf32>
    %148 = arith.truncf %144 : vector<8x8xf32> to vector<8x8xbf16>
    %cst_53 = arith.constant dense<0.000000e+00> : vector<8x16xf32>
    %149 = tpu.matmul %148, %138, %cst_53 {dimension_numbers = #tpu.dot_dimension_numbers<[1], [0], [0], [1], [0, 0, 1, 1], [], []>} : vector<8x8xbf16>, vector<8x16xbf16>, vector<8x16xf32> -> vector<8x16xf32>
    %150 = vector.broadcast %147 : vector<8x1xf32> to vector<8x16xf32>
    %151 = arith.mulf %149, %150 : vector<8x16xf32>
    %152 = tpu.concatenate %39, %55, %71, %87, %103, %119, %135, %151 in 1 : vector<8x16xf32>, vector<8x16xf32>, vector<8x16xf32>, vector<8x16xf32>, vector<8x16xf32>, vector<8x16xf32>, vector<8x16xf32>, vector<8x16xf32> -> vector<8x128xf32>
    %153 = arith.truncf %152 : vector<8x128xf32> to vector<8x128xbf16>
    %c0_54 = arith.constant 0 : index
    %c0_55 = arith.constant 0 : index
    %154 = vector.load %arg10[%c0_54, %c0_55] : memref<128x32xbf16, #tpu.memory_space<vmem>>, vector<128x32xbf16>
    %cst_56 = arith.constant dense<0.000000e+00> : vector<8x32xf32>
    %155 = tpu.matmul %153, %154, %cst_56 {dimension_numbers = #tpu.dot_dimension_numbers<[1], [0], [0], [1], [0, 0, 1, 1], [], []>} : vector<8x128xbf16>, vector<128x32xbf16>, vector<8x32xf32> -> vector<8x32xf32>
    %c0_57 = arith.constant 0 : index
    %c0_58 = arith.constant 0 : index
    %156 = vector.load %arg11[%c0_57, %c0_58] : memref<1x32xf32, #tpu.memory_space<vmem>>, vector<1x32xf32>
    %157 = vector.broadcast %156 : vector<1x32xf32> to vector<8x32xf32>
    %158 = arith.addf %155, %157 : vector<8x32xf32>
    %c0_59 = arith.constant 0 : index
    %c0_60 = arith.constant 0 : index
    %c0_61 = arith.constant 0 : index
    %159 = vector.load %arg12[%c0_59, %c0_60, %c0_61] : memref<1x8x32xf32, #tpu.memory_space<vmem>>, vector<1x8x32xf32>
    %160 = vector.shape_cast %159 : vector<1x8x32xf32> to vector<8x32xf32>
    %161 = vector.shape_cast %158 : vector<8x32xf32> to vector<1x8x32xf32>
    tpu.vector_store %arg12[%c0_59, %c0_60, %c0_61], %161 {strides = array<i32>} : memref<1x8x32xf32, #tpu.memory_space<vmem>>, vector<1x8x32xf32>,
    return
  }
  func.func @transform_0(%arg0: i32) -> (i32, i32, i32) {
    %c0_i32 = arith.constant 0 : i32
    %c0_i32_0 = arith.constant 0 : i32
    %c0_i32_1 = arith.constant 0 : i32
    return %arg0, %c0_i32, %c0_i32_0 : i32, i32, i32
  }
  func.func @transform_1(%arg0: i32) -> (i32, i32, i32) {
    %c0_i32 = arith.constant 0 : i32
    %c0_i32_0 = arith.constant 0 : i32
    %c0_i32_1 = arith.constant 0 : i32
    return %arg0, %c0_i32, %c0_i32_0 : i32, i32, i32
  }
  func.func @transform_2(%arg0: i32) -> (i32, i32, i32) {
    %c0_i32 = arith.constant 0 : i32
    %c0_i32_0 = arith.constant 0 : i32
    %c0_i32_1 = arith.constant 0 : i32
    return %arg0, %c0_i32, %c0_i32_0 : i32, i32, i32
  }
  func.func @transform_3(%arg0: i32) -> (i32, i32) {
    %c0_i32 = arith.constant 0 : i32
    %c0_i32_0 = arith.constant 0 : i32
    %c0_i32_1 = arith.constant 0 : i32
    return %c0_i32, %c0_i32_0 : i32, i32
  }
  func.func @transform_4(%arg0: i32) -> (i32, i32) {
    %c0_i32 = arith.constant 0 : i32
    %c0_i32_0 = arith.constant 0 : i32
    %c0_i32_1 = arith.constant 0 : i32
    return %c0_i32, %c0_i32_0 : i32, i32
  }
  func.func @transform_5(%arg0: i32) -> (i32, i32) {
    %c0_i32 = arith.constant 0 : i32
    %c0_i32_0 = arith.constant 0 : i32
    %c0_i32_1 = arith.constant 0 : i32
    return %c0_i32, %c0_i32_0 : i32, i32
  }
  func.func @transform_6(%arg0: i32) -> (i32, i32) {
    %c0_i32 = arith.constant 0 : i32
    %c0_i32_0 = arith.constant 0 : i32
    %c0_i32_1 = arith.constant 0 : i32
    return %c0_i32, %c0_i32_0 : i32, i32
  }
  func.func @transform_7(%arg0: i32) -> (i32, i32) {
    %c0_i32 = arith.constant 0 : i32
    %c0_i32_0 = arith.constant 0 : i32
    %c0_i32_1 = arith.constant 0 : i32
    return %c0_i32, %c0_i32_0 : i32, i32
  }
  func.func @transform_8(%arg0: i32) -> (i32, i32) {
    %c0_i32 = arith.constant 0 : i32
    %c0_i32_0 = arith.constant 0 : i32
    %c0_i32_1 = arith.constant 0 : i32
    return %c0_i32, %c0_i32_0 : i32, i32
  }
  func.func @transform_9(%arg0: i32) -> (i32, i32) {
    %c0_i32 = arith.constant 0 : i32
    %c0_i32_0 = arith.constant 0 : i32
    %c0_i32_1 = arith.constant 0 : i32
    return %c0_i32, %c0_i32_0 : i32, i32
  }
  func.func @transform_10(%arg0: i32) -> (i32, i32) {
    %c0_i32 = arith.constant 0 : i32
    %c0_i32_0 = arith.constant 0 : i32
    %c0_i32_1 = arith.constant 0 : i32
    return %c0_i32, %c0_i32_0 : i32, i32
  }
  func.func @transform_11(%arg0: i32) -> (i32, i32, i32) {
    %c0_i32 = arith.constant 0 : i32
    %c0_i32_0 = arith.constant 0 : i32
    %c0_i32_1 = arith.constant 0 : i32
    return %arg0, %c0_i32, %c0_i32_0 : i32, i32, i32
  }
}

</mosaic_0001>

<llo_original>
// kernel: cattention.1
$region0: #{cattention.1}
  #allocation0 [shape = 'u32[]', space=smem, size = 0x4, offset = 0x4, fixed_abs, tag = 'smem constant byte address 0x4 - core index']
  #allocation1 [shape = 'u32[144,128]{1,0:T(1,128)}', space=vmem, size = 0x12000, scoped, tag = 'internal scratch']
  %s0 = inlined_call_operand.vmem [shape: bf16[2,8,32], index: 0, kind: input, shape index: {}]
  %s1 = inlined_call_operand.vmem [shape: bf16[2,8,32], index: 1, kind: input, shape index: {}]
  %s2 = inlined_call_operand.vmem [shape: bf16[2,8,32], index: 2, kind: input, shape index: {}]
  %s3 = inlined_call_operand.vmem [shape: bf16[32,128], index: 3, kind: input, shape index: {}]
  %s4 = inlined_call_operand.vmem [shape: f32[1,128], index: 4, kind: input, shape index: {}]
  %s5 = inlined_call_operand.vmem [shape: bf16[32,128], index: 5, kind: input, shape index: {}]
  %s6 = inlined_call_operand.vmem [shape: f32[1,128], index: 6, kind: input, shape index: {}]
  %s7 = inlined_call_operand.vmem [shape: bf16[32,128], index: 7, kind: input, shape index: {}]
  %s8 = inlined_call_operand.vmem [shape: f32[1,128], index: 8, kind: input, shape index: {}]
  %s9 = inlined_call_operand.vmem [shape: bf16[128,32], index: 9, kind: input, shape index: {}]
  %s10 = inlined_call_operand.vmem [shape: f32[1,32], index: 10, kind: input, shape index: {}]
  %s11 = inlined_call_operand.hbm [shape: f32[2,8,32], index: 11, kind: output, shape index: {}]
  %s12 = sld [smem:[#allocation0]]
  $region77: #{cattention.1} parent=0
    _
  %s14 = ssub.s32 1, %s12
  %s15 = scalar_select 0, %s14, %s12
  $region1: #{cattention.1} parent=0
    #allocation2 [shape = 'u8[8192]{0}', space=vmem, size = 0x2000, scoped, tag = 'output window, operand 0']
    #allocation3 [shape = 's32[2]{0}', space=sflag, size = 0x8, scoped, tag = 'scoped memory for cattention.1']
    %16 = vsyncpa [#allocation3], 0
    %s17 = scalar_lea.sflag [#allocation3], 1
    %18 = vsyncpa %s17, 0
    loop: start=0, step=1, limit=4
    $region2: #{cattention.1} parent=1 // loop_pre_header
      _
    $region3: #{cattention.1} parent=1 // loop_header
      %s20 = sphi 0, %s24
      %p21 = scmp.ge.s32.totalorder %s20, 4
      %s30 = sphi 0, %s32
      %s33 = sphi 0, %s30
      %s34 = sphi 0, %s33
      %s50 = sphi 0, %s34
      %s56 = sphi 0, %s58
      %s59 = sphi 0, %s56
      %s60 = sphi 0, %s59
      %s76 = sphi 0, %s60
      %s82 = sphi 0, %s84
      %s85 = sphi 0, %s82
      %s86 = sphi 0, %s85
      %s102 = sphi 0, %s86
      %s106 = sphi 0, %s106
      %s108 = sphi 0, %s106
      %s109 = sphi 0, %s108
      %s123 = sphi 0, %s109
      %s127 = sphi 0, %s127
      %s129 = sphi 0, %s127
      %s130 = sphi 0, %s129
      %s144 = sphi 0, %s130
      %s148 = sphi 0, %s148
      %s150 = sphi 0, %s148
      %s151 = sphi 0, %s150
      %s165 = sphi 0, %s151
      %s169 = sphi 0, %s169
      %s171 = sphi 0, %s169
      %s172 = sphi 0, %s171
      %s186 = sphi 0, %s172
      %s190 = sphi 0, %s190
      %s192 = sphi 0, %s190
      %s193 = sphi 0, %s192
      %s207 = sphi 0, %s193
      %s211 = sphi 0, %s211
      %s213 = sphi 0, %s211
      %s214 = sphi 0, %s213
      %s228 = sphi 0, %s214
      %s232 = sphi 0, %s232
      %s234 = sphi 0, %s232
      %s235 = sphi 0, %s234
      %s249 = sphi 0, %s235
      %s253 = sphi 0, %s253
      %s255 = sphi 0, %s253
      %s256 = sphi 0, %s255
      %s270 = sphi 0, %s256
      %s276 = sphi 0, %s278
      %s279 = sphi 0, %s276
      %s280 = sphi 0, %s279
      %s296 = sphi 0, %s280
    $region4: #{cattention.1} parent=1 // loop_header_branch
      %23 = sbr.rel (%p21) target = $region8
    $region5: #{cattention.1} parent=1 // loop_body
      %s25 = ssub.s32 %s20, 1
      %s26 = ssub.s32 %s20, 2
      %s27 = sadd.s32 %s20, 1
      %s28 = ssub.s32 %s20, %s27
      %p29 = scmp.eq.s32.totalorder %s28, 0
      %s31 = sadd.s32 %s30, 1
      %s32 = scalar_select %p29, %s30, %s31
      %p35 = pneg %p29
      %p36 = scmp.eq.s32.totalorder %s20, 1
      %p37 = por %p35, %p36
      %p38 = scmp.ne.s32.totalorder %s30, %s33
      %p39 = scmp.eq.s32.totalorder %s20, 0
      %p40 = por %p38, %p39
      %p41 = scmp.ne.s32.totalorder %s30, %s33
      %p42 = scmp.eq.s32.totalorder %s25, 1
      %p43 = por %p41, %p42
      %p44 = scmp.ne.s32.totalorder %s33, %s34
      %p45 = scmp.eq.s32.totalorder %s25, 0
      %p46 = por %p44, %p45
      %p47 = scmp.ne.s32.totalorder %s33, %s34
      %p48 = scmp.eq.s32.totalorder %s26, 1
      %p49 = por %p47, %p48
      %p51 = scmp.ne.s32.totalorder %s34, %s50
      %p52 = scmp.eq.s32.totalorder %s26, 0
      %p53 = por %p51, %p52
      %s54 = ssub.s32 %s20, %s27
      %p55 = scmp.eq.s32.totalorder %s54, 0
      %s57 = sadd.s32 %s56, 1
      %s58 = scalar_select %p55, %s56, %s57
      %p61 = pneg %p55
      %p62 = scmp.eq.s32.totalorder %s20, 1
      %p63 = por %p61, %p62
      %p64 = scmp.ne.s32.totalorder %s56, %s59
      %p65 = scmp.eq.s32.totalorder %s20, 0
      %p66 = por %p64, %p65
      %p67 = scmp.ne.s32.totalorder %s56, %s59
      %p68 = scmp.eq.s32.totalorder %s25, 1
      %p69 = por %p67, %p68
      %p70 = scmp.ne.s32.totalorder %s59, %s60
      %p71 = scmp.eq.s32.totalorder %s25, 0
      %p72 = por %p70, %p71
      %p73 = scmp.ne.s32.totalorder %s59, %s60
      %p74 = scmp.eq.s32.totalorder %s26, 1
      %p75 = por %p73, %p74
      %p77 = scmp.ne.s32.totalorder %s60, %s76
      %p78 = scmp.eq.s32.totalorder %s26, 0
      %p79 = por %p77, %p78
      %s80 = ssub.s32 %s20, %s27
      %p81 = scmp.eq.s32.totalorder %s80, 0
      %s83 = sadd.s32 %s82, 1
      %s84 = scalar_select %p81, %s82, %s83
      %p87 = pneg %p81
      %p88 = scmp.eq.s32.totalorder %s20, 1
      %p89 = por %p87, %p88
      %p90 = scmp.ne.s32.totalorder %s82, %s85
      %p91 = scmp.eq.s32.totalorder %s20, 0
      %p92 = por %p90, %p91
      %p93 = scmp.ne.s32.totalorder %s82, %s85
      %p94 = scmp.eq.s32.totalorder %s25, 1
      %p95 = por %p93, %p94
      %p96 = scmp.ne.s32.totalorder %s85, %s86
      %p97 = scmp.eq.s32.totalorder %s25, 0
      %p98 = por %p96, %p97
      %p99 = scmp.ne.s32.totalorder %s85, %s86
      %p100 = scmp.eq.s32.totalorder %s26, 1
      %p101 = por %p99, %p100
      %p103 = scmp.ne.s32.totalorder %s86, %s102
      %p104 = scmp.eq.s32.totalorder %s26, 0
      %p105 = por %p103, %p104
      %s107 = sadd.s32 %s106, 1
      %p110 = scmp.eq.s32.totalorder %s20, 1
      %p111 = scmp.ne.s32.totalorder %s106, %s108
      %p112 = scmp.eq.s32.totalorder %s20, 0
      %p113 = por %p111, %p112
      %p114 = scmp.ne.s32.totalorder %s106, %s108
      %p115 = scmp.eq.s32.totalorder %s25, 1
      %p116 = por %p114, %p115
      %p117 = scmp.ne.s32.totalorder %s108, %s109
      %p118 = scmp.eq.s32.totalorder %s25, 0
      %p119 = por %p117, %p118
      %p120 = scmp.ne.s32.totalorder %s108, %s109
      %p121 = scmp.eq.s32.totalorder %s26, 1
      %p122 = por %p120, %p121
      %p124 = scmp.ne.s32.totalorder %s109, %s123
      %p125 = scmp.eq.s32.totalorder %s26, 0
      %p126 = por %p124, %p125
      %s128 = sadd.s32 %s127, 1
      %p131 = scmp.eq.s32.totalorder %s20, 1
      %p132 = scmp.ne.s32.totalorder %s127, %s129
      %p133 = scmp.eq.s32.totalorder %s20, 0
      %p134 = por %p132, %p133
      %p135 = scmp.ne.s32.totalorder %s127, %s129
      %p136 = scmp.eq.s32.totalorder %s25, 1
      %p137 = por %p135, %p136
      %p138 = scmp.ne.s32.totalorder %s129, %s130
      %p139 = scmp.eq.s32.totalorder %s25, 0
      %p140 = por %p138, %p139
      %p141 = scmp.ne.s32.totalorder %s129, %s130
      %p142 = scmp.eq.s32.totalorder %s26, 1
      %p143 = por %p141, %p142
      %p145 = scmp.ne.s32.totalorder %s130, %s144
      %p146 = scmp.eq.s32.totalorder %s26, 0
      %p147 = por %p145, %p146
      %s149 = sadd.s32 %s148, 1
      %p152 = scmp.eq.s32.totalorder %s20, 1
      %p153 = scmp.ne.s32.totalorder %s148, %s150
      %p154 = scmp.eq.s32.totalorder %s20, 0
      %p155 = por %p153, %p154
      %p156 = scmp.ne.s32.totalorder %s148, %s150
      %p157 = scmp.eq.s32.totalorder %s25, 1
      %p158 = por %p156, %p157
      %p159 = scmp.ne.s32.totalorder %s150, %s151
      %p160 = scmp.eq.s32.totalorder %s25, 0
      %p161 = por %p159, %p160
      %p162 = scmp.ne.s32.totalorder %s150, %s151
      %p163 = scmp.eq.s32.totalorder %s26, 1
      %p164 = por %p162, %p163
      %p166 = scmp.ne.s32.totalorder %s151, %s165
      %p167 = scmp.eq.s32.totalorder %s26, 0
      %p168 = por %p166, %p167
      %s170 = sadd.s32 %s169, 1
      %p173 = scmp.eq.s32.totalorder %s20, 1
      %p174 = scmp.ne.s32.totalorder %s169, %s171
      %p175 = scmp.eq.s32.totalorder %s20, 0
      %p176 = por %p174, %p175
      %p177 = scmp.ne.s32.totalorder %s169, %s171
      %p178 = scmp.eq.s32.totalorder %s25, 1
      %p179 = por %p177, %p178
      %p180 = scmp.ne.s32.totalorder %s171, %s172
      %p181 = scmp.eq.s32.totalorder %s25, 0
      %p182 = por %p180, %p181
      %p183 = scmp.ne.s32.totalorder %s171, %s172
      %p184 = scmp.eq.s32.totalorder %s26, 1
      %p185 = por %p183, %p184
      %p187 = scmp.ne.s32.totalorder %s172, %s186
      %p188 = scmp.eq.s32.totalorder %s26, 0
      %p189 = por %p187, %p188
      %s191 = sadd.s32 %s190, 1
      %p194 = scmp.eq.s32.totalorder %s20, 1
      %p195 = scmp.ne.s32.totalorder %s190, %s192
      %p196 = scmp.eq.s32.totalorder %s20, 0
      %p197 = por %p195, %p196
      %p198 = scmp.ne.s32.totalorder %s190, %s192
      %p199 = scmp.eq.s32.totalorder %s25, 1
      %p200 = por %p198, %p199
      %p201 = scmp.ne.s32.totalorder %s192, %s193
      %p202 = scmp.eq.s32.totalorder %s25, 0
      %p203 = por %p201, %p202
      %p204 = scmp.ne.s32.totalorder %s192, %s193
      %p205 = scmp.eq.s32.totalorder %s26, 1
      %p206 = por %p204, %p205
      %p208 = scmp.ne.s32.totalorder %s193, %s207
      %p209 = scmp.eq.s32.totalorder %s26, 0
      %p210 = por %p208, %p209
      %s212 = sadd.s32 %s211, 1
      %p215 = scmp.eq.s32.totalorder %s20, 1
      %p216 = scmp.ne.s32.totalorder %s211, %s213
      %p217 = scmp.eq.s32.totalorder %s20, 0
      %p218 = por %p216, %p217
      %p219 = scmp.ne.s32.totalorder %s211, %s213
      %p220 = scmp.eq.s32.totalorder %s25, 1
      %p221 = por %p219, %p220
      %p222 = scmp.ne.s32.totalorder %s213, %s214
      %p223 = scmp.eq.s32.totalorder %s25, 0
      %p224 = por %p222, %p223
      %p225 = scmp.ne.s32.totalorder %s213, %s214
      %p226 = scmp.eq.s32.totalorder %s26, 1
      %p227 = por %p225, %p226
      %p229 = scmp.ne.s32.totalorder %s214, %s228
      %p230 = scmp.eq.s32.totalorder %s26, 0
      %p231 = por %p229, %p230
      %s233 = sadd.s32 %s232, 1
      %p236 = scmp.eq.s32.totalorder %s20, 1
      %p237 = scmp.ne.s32.totalorder %s232, %s234
      %p238 = scmp.eq.s32.totalorder %s20, 0
      %p239 = por %p237, %p238
      %p240 = scmp.ne.s32.totalorder %s232, %s234
      %p241 = scmp.eq.s32.totalorder %s25, 1
      %p242 = por %p240, %p241
      %p243 = scmp.ne.s32.totalorder %s234, %s235
      %p244 = scmp.eq.s32.totalorder %s25, 0
      %p245 = por %p243, %p244
      %p246 = scmp.ne.s32.totalorder %s234, %s235
      %p247 = scmp.eq.s32.totalorder %s26, 1
      %p248 = por %p246, %p247
      %p250 = scmp.ne.s32.totalorder %s235, %s249
      %p251 = scmp.eq.s32.totalorder %s26, 0
      %p252 = por %p250, %p251
      %s254 = sadd.s32 %s253, 1
      %p257 = scmp.eq.s32.totalorder %s20, 1
      %p258 = scmp.ne.s32.totalorder %s253, %s255
      %p259 = scmp.eq.s32.totalorder %s20, 0
      %p260 = por %p258, %p259
      %p261 = scmp.ne.s32.totalorder %s253, %s255
      %p262 = scmp.eq.s32.totalorder %s25, 1
      %p263 = por %p261, %p262
      %p264 = scmp.ne.s32.totalorder %s255, %s256
      %p265 = scmp.eq.s32.totalorder %s25, 0
      %p266 = por %p264, %p265
      %p267 = scmp.ne.s32.totalorder %s255, %s256
      %p268 = scmp.eq.s32.totalorder %s26, 1
      %p269 = por %p267, %p268
      %p271 = scmp.ne.s32.totalorder %s256, %s270
      %p272 = scmp.eq.s32.totalorder %s26, 0
      %p273 = por %p271, %p272
      %s274 = ssub.s32 %s20, %s27
      %p275 = scmp.eq.s32.totalorder %s274, 0
      %s277 = sadd.s32 %s276, 1
      %s278 = scalar_select %p275, %s276, %s277
      %p281 = pneg %p275
      %p282 = scmp.eq.s32.totalorder %s20, 1
      %p283 = por %p281, %p282
      %p284 = scmp.ne.s32.totalorder %s276, %s279
      %p285 = scmp.eq.s32.totalorder %s20, 0
      %p286 = por %p284, %p285
      %p287 = scmp.ne.s32.totalorder %s276, %s279
      %p288 = scmp.eq.s32.totalorder %s25, 1
      %p289 = por %p287, %p288
      %p290 = scmp.ne.s32.totalorder %s279, %s280
      %p291 = scmp.eq.s32.totalorder %s25, 0
      %p292 = por %p290, %p291
      %p293 = scmp.ne.s32.totalorder %s279, %s280
      %p294 = scmp.eq.s32.totalorder %s26, 1
      %p295 = por %p293, %p294
      %p297 = scmp.ne.s32.totalorder %s280, %s296
      %p298 = scmp.eq.s32.totalorder %s26, 0
      %p299 = por %p297, %p298
      %p300 = scmp.le.s32.totalorder 1, %s20
      %p301 = scmp.lt.s32.totalorder %s20, 3
      %p302 = pnand %p300, %p301
      %p303 = pneg %p302
      // Predicated region
      $region9: #{cattention.1} parent=5 // pred_check
        _
      $region10: #{cattention.1} parent=5 // pred_check_branch
        %305 = sbr.rel (%p302) target = $region12
      $region11: #{cattention.1} parent=5 // pred_region
        %s306 = ssub.s32 %s20, 1
        // Predicated region
        $region13: #{cattention.1} parent=11 // pred_check
          %p307 = pneg %p119
        $region14: #{cattention.1} parent=11 // pred_check_branch
          %309 = sbr.rel (%p307) target = $region16
        $region15: #{cattention.1} parent=11 // pred_region
          _
        $region16: #{cattention.1} parent=11 // pred_fallthru
          _
        // Predicated region
        $region17: #{cattention.1} parent=11 // pred_check
          %p310 = pneg %p140
        $region18: #{cattention.1} parent=11 // pred_check_branch
          %312 = sbr.rel (%p310) target = $region20
        $region19: #{cattention.1} parent=11 // pred_region
          _
        $region20: #{cattention.1} parent=11 // pred_fallthru
          _
        // Predicated region
        $region21: #{cattention.1} parent=11 // pred_check
          %p313 = pneg %p161
        $region22: #{cattention.1} parent=11 // pred_check_branch
          %315 = sbr.rel (%p313) target = $region24
        $region23: #{cattention.1} parent=11 // pred_region
          _
        $region24: #{cattention.1} parent=11 // pred_fallthru
          _
        // Predicated region
        $region25: #{cattention.1} parent=11 // pred_check
          %p316 = pneg %p182
        $region26: #{cattention.1} parent=11 // pred_check_branch
          %318 = sbr.rel (%p316) target = $region28
        $region27: #{cattention.1} parent=11 // pred_region
          _
        $region28: #{cattention.1} parent=11 // pred_fallthru
          _
        // Predicated region
        $region29: #{cattention.1} parent=11 // pred_check
          %p319 = pneg %p203
        $region30: #{cattention.1} parent=11 // pred_check_branch
          %321 = sbr.rel (%p319) target = $region32
        $region31: #{cattention.1} parent=11 // pred_region
          _
        $region32: #{cattention.1} parent=11 // pred_fallthru
          _
        // Predicated region
        $region33: #{cattention.1} parent=11 // pred_check
          %p322 = pneg %p224
        $region34: #{cattention.1} parent=11 // pred_check_branch
          %324 = sbr.rel (%p322) target = $region36
        $region35: #{cattention.1} parent=11 // pred_region
          _
        $region36: #{cattention.1} parent=11 // pred_fallthru
          _
        // Predicated region
        $region37: #{cattention.1} parent=11 // pred_check
          %p325 = pneg %p245
        $region38: #{cattention.1} parent=11 // pred_check_branch
          %327 = sbr.rel (%p325) target = $region40
        $region39: #{cattention.1} parent=11 // pred_region
          _
        $region40: #{cattention.1} parent=11 // pred_fallthru
          _
        // Predicated region
        $region41: #{cattention.1} parent=11 // pred_check
          %p328 = pneg %p266
        $region42: #{cattention.1} parent=11 // pred_check_branch
          %330 = sbr.rel (%p328) target = $region44
        $region43: #{cattention.1} parent=11 // pred_region
          _
        $region44: #{cattention.1} parent=11 // pred_fallthru
          _
      $region12: #{cattention.1} parent=5 // pred_fallthru
        _
      %p331 = scmp.lt.s32.totalorder %s20, 2
      // Predicated region
      $region45: #{cattention.1} parent=5 // pred_check
        %p332 = pneg %p331
      $region46: #{cattention.1} parent=5 // pred_check_branch
        %334 = sbr.rel (%p332) target = $region48
      $region47: #{cattention.1} parent=5 // pred_region
        // Predicated region
        $region49: #{cattention.1} parent=47 // pred_check
          %p335 = pneg %p40
        $region50: #{cattention.1} parent=47 // pred_check_branch
          %337 = sbr.rel (%p335) target = $region52
        $region51: #{cattention.1} parent=47 // pred_region
          %p338 = scmp.lt.s32.totalorder %s20, 1
          %s339 = scalar_select %p338, %s20, 1
          %s340 = smul.addr %s339, 4
          %s341 = scalar_lea.vmem %s0, %s340
        $region52: #{cattention.1} parent=47 // pred_fallthru
          _
        // Predicated region
        $region53: #{cattention.1} parent=47 // pred_check
          %p342 = pneg %p66
        $region54: #{cattention.1} parent=47 // pred_check_branch
          %344 = sbr.rel (%p342) target = $region56
        $region55: #{cattention.1} parent=47 // pred_region
          %p345 = scmp.lt.s32.totalorder %s20, 1
          %s346 = scalar_select %p345, %s20, 1
          %s347 = smul.addr %s346, 4
          %s348 = scalar_lea.vmem %s1, %s347
        $region56: #{cattention.1} parent=47 // pred_fallthru
          _
        // Predicated region
        $region57: #{cattention.1} parent=47 // pred_check
          %p349 = pneg %p92
        $region58: #{cattention.1} parent=47 // pred_check_branch
          %351 = sbr.rel (%p349) target = $region60
        $region59: #{cattention.1} parent=47 // pred_region
          %p352 = scmp.lt.s32.totalorder %s20, 1
          %s353 = scalar_select %p352, %s20, 1
          %s354 = smul.addr %s353, 4
          %s355 = scalar_lea.vmem %s2, %s354
        $region60: #{cattention.1} parent=47 // pred_fallthru
          _
      $region48: #{cattention.1} parent=5 // pred_fallthru
        _
      %p356 = scmp.le.s32.totalorder 1, %s20
      %p357 = scmp.lt.s32.totalorder %s20, 3
      %p358 = pnand %p356, %p357
      %p359 = pneg %p358
      // Predicated region
      $region61: #{cattention.1} parent=5 // pred_check
        _
      $region62: #{cattention.1} parent=5 // pred_check_branch
        %361 = sbr.rel (%p358) target = $region64
      $region63: #{cattention.1} parent=5 // pred_region
        %s362 = ssub.s32 %s20, 1
        %p363 = scmp.lt.s32.totalorder %s25, 1
        %s364 = scalar_select %p363, %s25, 1
        %s365 = smul.addr %s364, 4
        %s366 = scalar_lea.vmem %s0, %s365
        %p367 = pneg %p46
        %p368 = pneg %p43
        %p369 = scmp.lt.s32.totalorder %s25, 1
        %s370 = scalar_select %p369, %s25, 1
        %s371 = smul.addr %s370, 4
        %s372 = scalar_lea.vmem %s1, %s371
        %p373 = pneg %p72
        %p374 = pneg %p69
        %p375 = scmp.lt.s32.totalorder %s25, 1
        %s376 = scalar_select %p375, %s25, 1
        %s377 = smul.addr %s376, 4
        %s378 = scalar_lea.vmem %s2, %s377
        %p379 = pneg %p98
        %p380 = pneg %p95
        %p381 = pneg %p119
        %p382 = pneg %p116
        %p383 = pneg %p140
        %p384 = pneg %p137
        %p385 = pneg %p161
        %p386 = pneg %p158
        %p387 = pneg %p182
        %p388 = pneg %p179
        %p389 = pneg %p203
        %p390 = pneg %p200
        %p391 = pneg %p224
        %p392 = pneg %p221
        %p393 = pneg %p245
        %p394 = pneg %p242
        %p395 = pneg %p266
        %p396 = pneg %p263
        %p397 = pneg %p292
        %p398 = pneg %p289
        %s399 = sand.u32 %s279, 1
        %s400 = scalar_lea.sflag [#allocation3], %s399
        %s401 = sand.u32 %s279, 1
        %s402 = smul.addr %s401, 8
        %s403 = scalar_lea.vmem [#allocation2], %s402
        %p404 = scmp.lt.s32.totalorder %s25, 1
        %s405 = scalar_select %p404, %s25, 1
        %s406 = smul.addr %s405, 4
        %s407 = scalar_lea.vmem %s0, %s406
        %p408 = scmp.lt.s32.totalorder %s25, 1
        %s409 = scalar_select %p408, %s25, 1
        %s410 = smul.addr %s409, 4
        %s411 = scalar_lea.vmem %s1, %s410
        %p412 = scmp.lt.s32.totalorder %s25, 1
        %s413 = scalar_select %p412, %s25, 1
        %s414 = smul.addr %s413, 4
        %s415 = scalar_lea.vmem %s2, %s414
        %v417 = vld [vmem:[%s407] sm:$0xf]
        %v418 = vld [vmem:[%s3] sm:$0xf]
        %v419 = vld [vmem:[%s3 + $0x4] sm:$0xf]
        %v420 = vld [vmem:[%s3 + $0x8] sm:$0xf]
        %v421 = vld [vmem:[%s3 + $0xc] sm:$0xf]
        %v422 = vld [vmem:[%s4] sm:$0x1]
        %v424 = vlaneseq
        %v425 = vshrl.u32 %v424, 7
        %v426 = vsub.s32 0, %v425
        %v427 = vrot.slane %v422, %v426
        %v433 = vunpack.c.l.b16 %v418
        %v434 = vunpack.c.l.b16 %v419
        %v435 = vunpack.c.l.b16 %v420
        %v436 = vunpack.c.l.b16 %v421
        %v437 = vpack.c.b16 %v434, %v433
        %v438 = vpack.c.b16 %v436, %v435
        %vm441 = vcmask 261120
        %v443 = vsel %vm441, %v417, 0
        %445 = vmatprep.subr.bf16.mxu0 0
        %446 = vmatpush1.bf16.msra.mxu0 0
        %447 = vmatprep.subr.bf16.mxu0 0
        %448 = vmatpush1.bf16.msra.mxu0 0
        %449 = vmatprep.subr.bf16.mxu0 0
        %450 = vmatpush1.bf16.msra.mxu0 0
        %451 = vmatprep.subr.bf16.mxu0 0
        %452 = vmatpush1.bf16.msra.mxu0 0
        %453 = vmatprep.subr.bf16.mxu0 0
        %454 = vmatpush1.bf16.msra.mxu0 0
        %455 = vmatprep.subr.bf16.mxu0 0
        %456 = vmatpush1.bf16.msra.mxu0 0
        %457 = vmatprep.subr.bf16.mxu0 0
        %458 = vmatpush1.bf16.msra.mxu0 %v438
        %459 = vmatprep.subr.bf16.mxu0 0
        %460 = vmatpush1.bf16.msra.mxu0 %v437
        %461 = vmatprep.subr.bf16.mxu0 0
        %462 = vmatpush2.bf16.msra.mxu0 0
        %463 = vmatprep.subr.bf16.mxu0 0
        %464 = vmatpush2.bf16.msra.mxu0 0
        %465 = vmatprep.subr.bf16.mxu0 0
        %466 = vmatpush2.bf16.msra.mxu0 0
        %467 = vmatprep.subr.bf16.mxu0 0
        %468 = vmatpush2.bf16.msra.mxu0 0
        %469 = vmatprep.subr.bf16.mxu0 0
        %470 = vmatpush2.bf16.msra.mxu0 0
        %471 = vmatprep.subr.bf16.mxu0 0
        %472 = vmatpush2.bf16.msra.mxu0 0
        %473 = vmatprep.subr.bf16.mxu0 0
        %474 = vmatpush2.bf16.msra.mxu0 0
        %475 = vmatprep.subr.bf16.mxu0 0
        %476 = vmatpush2.bf16.msra.mxu0 0
        %477 = vmatprep.mubr.bf16.mxu0 0
        %478 = vmatmul.mubr.bf16.gmra.mxu0 %v443
        %v479 = vpop.f32.mrf.mxu0
        %v480 = vadd.f32 %v427, %v479
        %v481 = vpop.f32.mrf.mxu0
        %v482 = vpop.f32.mrf.mxu0
        %v483 = vpop.f32.mrf.mxu0
        %484 = vdwg.mxu0
        %v485 = vld [vmem:[%s411] sm:$0xf]
        %v486 = vld [vmem:[%s5] sm:$0xf]
        %v487 = vld [vmem:[%s5 + $0x4] sm:$0xf]
        %v488 = vld [vmem:[%s5 + $0x8] sm:$0xf]
        %v489 = vld [vmem:[%s5 + $0xc] sm:$0xf]
        %v490 = vld [vmem:[%s6] sm:$0x1]
        %v492 = vlaneseq
        %v493 = vshrl.u32 %v492, 7
        %v494 = vsub.s32 0, %v493
        %v495 = vrot.slane %v490, %v494
        %v501 = vunpack.c.l.b16 %v486
        %v502 = vunpack.c.l.b16 %v487
        %v503 = vunpack.c.l.b16 %v488
        %v504 = vunpack.c.l.b16 %v489
        %v505 = vpack.c.b16 %v502, %v501
        %v506 = vpack.c.b16 %v504, %v503
        %v510 = vsel %vm441, %v485, 0
        %512 = vmatprep.subr.bf16.mxu0 0
        %513 = vmatpush1.bf16.msra.mxu0 0
        %514 = vmatprep.subr.bf16.mxu0 0
        %515 = vmatpush1.bf16.msra.mxu0 0
        %516 = vmatprep.subr.bf16.mxu0 0
        %517 = vmatpush1.bf16.msra.mxu0 0
        %518 = vmatprep.subr.bf16.mxu0 0
        %519 = vmatpush1.bf16.msra.mxu0 0
        %520 = vmatprep.subr.bf16.mxu0 0
        %521 = vmatpush1.bf16.msra.mxu0 0
        %522 = vmatprep.subr.bf16.mxu0 0
        %523 = vmatpush1.bf16.msra.mxu0 0
        %524 = vmatprep.subr.bf16.mxu0 0
        %525 = vmatpush1.bf16.msra.mxu0 %v506
        %526 = vmatprep.subr.bf16.mxu0 0
        %527 = vmatpush1.bf16.msra.mxu0 %v505
        %528 = vmatprep.subr.bf16.mxu0 0
        %529 = vmatpush2.bf16.msra.mxu0 0
        %530 = vmatprep.subr.bf16.mxu0 0
        %531 = vmatpush2.bf16.msra.mxu0 0
        %532 = vmatprep.subr.bf16.mxu0 0
        %533 = vmatpush2.bf16.msra.mxu0 0
        %534 = vmatprep.subr.bf16.mxu0 0
        %535 = vmatpush2.bf16.msra.mxu0 0
        %536 = vmatprep.subr.bf16.mxu0 0
        %537 = vmatpush2.bf16.msra.mxu0 0
        %538 = vmatprep.subr.bf16.mxu0 0
        %539 = vmatpush2.bf16.msra.mxu0 0
        %540 = vmatprep.subr.bf16.mxu0 0
        %541 = vmatpush2.bf16.msra.mxu0 0
        %542 = vmatprep.subr.bf16.mxu0 0
        %543 = vmatpush2.bf16.msra.mxu0 0
        %544 = vmatprep.mubr.bf16.mxu0 0
        %545 = vmatmul.mubr.bf16.gmra.mxu0 %v510
        %v546 = vpop.f32.mrf.mxu0
        %v547 = vadd.f32 %v495, %v546
        %v548 = vpop.f32.mrf.mxu0
        %v549 = vpop.f32.mrf.mxu0
        %v550 = vpop.f32.mrf.mxu0
        %551 = vdwg.mxu0
        %v552 = vld [vmem:[%s415] sm:$0xf]
        %v553 = vld [vmem:[%s7] sm:$0xf]
        %v554 = vld [vmem:[%s7 + $0x4] sm:$0xf]
        %v555 = vld [vmem:[%s7 + $0x8] sm:$0xf]
        %v556 = vld [vmem:[%s7 + $0xc] sm:$0xf]
        %v557 = vld [vmem:[%s8] sm:$0x1]
        %v559 = vlaneseq
        %v560 = vshrl.u32 %v559, 7
        %v561 = vsub.s32 0, %v560
        %v562 = vrot.slane %v557, %v561
        %v568 = vunpack.c.l.b16 %v553
        %v569 = vunpack.c.l.b16 %v554
        %v570 = vunpack.c.l.b16 %v555
        %v571 = vunpack.c.l.b16 %v556
        %v572 = vpack.c.b16 %v569, %v568
        %v573 = vpack.c.b16 %v571, %v570
        %v577 = vsel %vm441, %v552, 0
        %579 = vmatprep.subr.bf16.mxu0 0
        %580 = vmatpush1.bf16.msra.mxu0 0
        %581 = vmatprep.subr.bf16.mxu0 0
        %582 = vmatpush1.bf16.msra.mxu0 0
        %583 = vmatprep.subr.bf16.mxu0 0
        %584 = vmatpush1.bf16.msra.mxu0 0
        %585 = vmatprep.subr.bf16.mxu0 0
        %586 = vmatpush1.bf16.msra.mxu0 0
        %587 = vmatprep.subr.bf16.mxu0 0
        %588 = vmatpush1.bf16.msra.mxu0 0
        %589 = vmatprep.subr.bf16.mxu0 0
        %590 = vmatpush1.bf16.msra.mxu0 0
        %591 = vmatprep.subr.bf16.mxu0 0
        %592 = vmatpush1.bf16.msra.mxu0 %v573
        %593 = vmatprep.subr.bf16.mxu0 0
        %594 = vmatpush1.bf16.msra.mxu0 %v572
        %595 = vmatprep.subr.bf16.mxu0 0
        %596 = vmatpush2.bf16.msra.mxu0 0
        %597 = vmatprep.subr.bf16.mxu0 0
        %598 = vmatpush2.bf16.msra.mxu0 0
        %599 = vmatprep.subr.bf16.mxu0 0
        %600 = vmatpush2.bf16.msra.mxu0 0
        %601 = vmatprep.subr.bf16.mxu0 0
        %602 = vmatpush2.bf16.msra.mxu0 0
        %603 = vmatprep.subr.bf16.mxu0 0
        %604 = vmatpush2.bf16.msra.mxu0 0
        %605 = vmatprep.subr.bf16.mxu0 0
        %606 = vmatpush2.bf16.msra.mxu0 0
        %607 = vmatprep.subr.bf16.mxu0 0
        %608 = vmatpush2.bf16.msra.mxu0 0
        %609 = vmatprep.subr.bf16.mxu0 0
        %610 = vmatpush2.bf16.msra.mxu0 0
        %611 = vmatprep.mubr.bf16.mxu0 0
        %612 = vmatmul.mubr.bf16.gmra.mxu0 %v577
        %v613 = vpop.f32.mrf.mxu0
        %v614 = vadd.f32 %v562, %v613
        %v615 = vpop.f32.mrf.mxu0
        %v616 = vpop.f32.mrf.mxu0
        %v617 = vpop.f32.mrf.mxu0
        %618 = vdwg.mxu0
        %v619 = vpack.c.bf16 %v480, %v480
        %v620 = vpack.c.bf16 %v547, %v547
        %v621 = vpack.c.bf16 %v614, %v614
        %vm622 = vcmask 130048
        %v624 = vsel %vm622, %v619, 0
        %v627 = vsel %vm622, %v620, 0
        %629 = vmatprep.subr.bf16.mxu0 0
        %630 = vmatpush1.bf16.xpose.msra.mxu0 0
        %631 = vmatprep.subr.bf16.mxu0 0
        %632 = vmatpush1.bf16.xpose.msra.mxu0 0
        %633 = vmatprep.subr.bf16.mxu0 0
        %634 = vmatpush1.bf16.xpose.msra.mxu0 0
        %635 = vmatprep.subr.bf16.mxu0 0
        %636 = vmatpush1.bf16.xpose.msra.mxu0 0
        %637 = vmatprep.subr.bf16.mxu0 0
        %638 = vmatpush1.bf16.xpose.msra.mxu0 0
        %639 = vmatprep.subr.bf16.mxu0 0
        %640 = vmatpush1.bf16.xpose.msra.mxu0 0
        %641 = vmatprep.subr.bf16.mxu0 0
        %642 = vmatpush1.bf16.xpose.msra.mxu0 0
        %643 = vmatprep.subr.bf16.mxu0 0
        %644 = vmatpush1.bf16.xpose.msra.mxu0 %v627
        %645 = vmatprep.subr.bf16.mxu0 0
        %646 = vmatpush2.bf16.xpose.msra.mxu0 0
        %647 = vmatprep.subr.bf16.mxu0 0
        %648 = vmatpush2.bf16.xpose.msra.mxu0 0
        %649 = vmatprep.subr.bf16.mxu0 0
        %650 = vmatpush2.bf16.xpose.msra.mxu0 0
        %651 = vmatprep.subr.bf16.mxu0 0
        %652 = vmatpush2.bf16.xpose.msra.mxu0 0
        %653 = vmatprep.subr.bf16.mxu0 0
        %654 = vmatpush2.bf16.xpose.msra.mxu0 0
        %655 = vmatprep.subr.bf16.mxu0 0
        %656 = vmatpush2.bf16.xpose.msra.mxu0 0
        %657 = vmatprep.subr.bf16.mxu0 0
        %658 = vmatpush2.bf16.xpose.msra.mxu0 0
        %659 = vmatprep.subr.bf16.mxu0 0
        %660 = vmatpush2.bf16.xpose.msra.mxu0 0
        %661 = vmatprep.mubr.bf16.mxu0 0
        %662 = vmatmul.mubr.bf16.gmra.mxu0 %v624
        %v663 = vpop.f32.mrf.mxu0
        %v664 = vadd.f32 0.0, %v663
        %v665 = vpop.f32.mrf.mxu0
        %v666 = vpop.f32.mrf.mxu0
        %v667 = vpop.f32.mrf.mxu0
        %668 = vdwg.mxu0
        %vm669 = vcmask 64512
        %v670 = vsel %vm669, %v664, -inf
        %671 = vmax.xlane.f32.xlu0 %v670
        %v672 = vpop.xlane.xlu0 %671
        %v673 = vsub.f32 %v664, %v672
        %v674 = vmul.f32 %v673, 1.442695
        %v675 = vpow.pop %v674
        %v676 = vsel %vm669, %v675, 0.0
        %677 = vadd.xlane.f32.xlu0 %v676
        %v678 = vpop.xlane.xlu0 %677
        %v679 = vrcp.pop %v678
        %v680 = vpack.c.bf16 %v675, %v675
        %v682 = vsel %vm669, %v680, 0
        %vm684 = vcmask 1043456
        %v686 = vsel %vm684, %v621, 0
        %688 = vmatprep.subr.bf16.mxu0 0
        %689 = vmatpush1.bf16.msra.mxu0 0
        %690 = vmatprep.subr.bf16.mxu0 0
        %691 = vmatpush1.bf16.msra.mxu0 0
        %692 = vmatprep.subr.bf16.mxu0 0
        %693 = vmatpush1.bf16.msra.mxu0 0
        %694 = vmatprep.subr.bf16.mxu0 0
        %695 = vmatpush1.bf16.msra.mxu0 0
        %696 = vmatprep.subr.bf16.mxu0 0
        %697 = vmatpush1.bf16.msra.mxu0 0
        %698 = vmatprep.subr.bf16.mxu0 0
        %699 = vmatpush1.bf16.msra.mxu0 0
        %700 = vmatprep.subr.bf16.mxu0 0
        %701 = vmatpush1.bf16.msra.mxu0 0
        %702 = vmatprep.subr.bf16.mxu0 0
        %703 = vmatpush1.bf16.msra.mxu0 %v686
        %704 = vmatprep.subr.bf16.mxu0 0
        %705 = vmatpush2.bf16.msra.mxu0 0
        %706 = vmatprep.subr.bf16.mxu0 0
        %707 = vmatpush2.bf16.msra.mxu0 0
        %708 = vmatprep.subr.bf16.mxu0 0
        %709 = vmatpush2.bf16.msra.mxu0 0
        %710 = vmatprep.subr.bf16.mxu0 0
        %711 = vmatpush2.bf16.msra.mxu0 0
        %712 = vmatprep.subr.bf16.mxu0 0
        %713 = vmatpush2.bf16.msra.mxu0 0
        %714 = vmatprep.subr.bf16.mxu0 0
        %715 = vmatpush2.bf16.msra.mxu0 0
        %716 = vmatprep.subr.bf16.mxu0 0
        %717 = vmatpush2.bf16.msra.mxu0 0
        %718 = vmatprep.subr.bf16.mxu0 0
        %719 = vmatpush2.bf16.msra.mxu0 0
        %720 = vmatprep.mubr.bf16.mxu0 0
        %721 = vmatmul.mubr.bf16.gmra.mxu0 %v682
        %v722 = vpop.f32.mrf.mxu0
        %v723 = vadd.f32 0.0, %v722
        %v724 = vpop.f32.mrf.mxu0
        %v725 = vpop.f32.mrf.mxu0
        %v726 = vpop.f32.mrf.mxu0
        %727 = vdwg.mxu0
        %v728 = vmul.f32 %v723, %v679
        %730 = vrot.lane.b32.xlu0 %v619, 112
        %v731 = vpop.permute.xlu0 %730
        %733 = vrot.lane.b32.xlu0 %v620, 112
        %v734 = vpop.permute.xlu0 %733
        %v736 = vsel %vm622, %v731, 0
        %v739 = vsel %vm622, %v734, 0
        %741 = vmatprep.subr.bf16.mxu0 0
        %742 = vmatpush1.bf16.xpose.msra.mxu0 0
        %743 = vmatprep.subr.bf16.mxu0 0
        %744 = vmatpush1.bf16.xpose.msra.mxu0 0
        %745 = vmatprep.subr.bf16.mxu0 0
        %746 = vmatpush1.bf16.xpose.msra.mxu0 0
        %747 = vmatprep.subr.bf16.mxu0 0
        %748 = vmatpush1.bf16.xpose.msra.mxu0 0
        %749 = vmatprep.subr.bf16.mxu0 0
        %750 = vmatpush1.bf16.xpose.msra.mxu0 0
        %751 = vmatprep.subr.bf16.mxu0 0
        %752 = vmatpush1.bf16.xpose.msra.mxu0 0
        %753 = vmatprep.subr.bf16.mxu0 0
        %754 = vmatpush1.bf16.xpose.msra.mxu0 0
        %755 = vmatprep.subr.bf16.mxu0 0
        %756 = vmatpush1.bf16.xpose.msra.mxu0 %v739
        %757 = vmatprep.subr.bf16.mxu0 0
        %758 = vmatpush2.bf16.xpose.msra.mxu0 0
        %759 = vmatprep.subr.bf16.mxu0 0
        %760 = vmatpush2.bf16.xpose.msra.mxu0 0
        %761 = vmatprep.subr.bf16.mxu0 0
        %762 = vmatpush2.bf16.xpose.msra.mxu0 0
        %763 = vmatprep.subr.bf16.mxu0 0
        %764 = vmatpush2.bf16.xpose.msra.mxu0 0
        %765 = vmatprep.subr.bf16.mxu0 0
        %766 = vmatpush2.bf16.xpose.msra.mxu0 0
        %767 = vmatprep.subr.bf16.mxu0 0
        %768 = vmatpush2.bf16.xpose.msra.mxu0 0
        %769 = vmatprep.subr.bf16.mxu0 0
        %770 = vmatpush2.bf16.xpose.msra.mxu0 0
        %771 = vmatprep.subr.bf16.mxu0 0
        %772 = vmatpush2.bf16.xpose.msra.mxu0 0
        %773 = vmatprep.mubr.bf16.mxu0 0
        %774 = vmatmul.mubr.bf16.gmra.mxu0 %v736
        %v775 = vpop.f32.mrf.mxu0
        %v776 = vadd.f32 0.0, %v775
        %v777 = vpop.f32.mrf.mxu0
        %v778 = vpop.f32.mrf.mxu0
        %v779 = vpop.f32.mrf.mxu0
        %780 = vdwg.mxu0
        %v781 = vsel %vm669, %v776, -inf
        %782 = vmax.xlane.f32.xlu0 %v781
        %v783 = vpop.xlane.xlu0 %782
        %v784 = vsub.f32 %v776, %v783
        %v785 = vmul.f32 %v784, 1.442695
        %v786 = vpow.pop %v785
        %v787 = vsel %vm669, %v786, 0.0
        %788 = vadd.xlane.f32.xlu0 %v787
        %v789 = vpop.xlane.xlu0 %788
        %v790 = vrcp.pop %v789
        %v791 = vpack.c.bf16 %v786, %v786
        %793 = vrot.lane.b32.xlu0 %v621, 112
        %v794 = vpop.permute.xlu0 %793
        %v796 = vsel %vm669, %v791, 0
        %v799 = vsel %vm684, %v794, 0
        %801 = vmatprep.subr.bf16.mxu0 0
        %802 = vmatpush1.bf16.msra.mxu0 0
        %803 = vmatprep.subr.bf16.mxu0 0
        %804 = vmatpush1.bf16.msra.mxu0 0
        %805 = vmatprep.subr.bf16.mxu0 0
        %806 = vmatpush1.bf16.msra.mxu0 0
        %807 = vmatprep.subr.bf16.mxu0 0
        %808 = vmatpush1.bf16.msra.mxu0 0
        %809 = vmatprep.subr.bf16.mxu0 0
        %810 = vmatpush1.bf16.msra.mxu0 0
        %811 = vmatprep.subr.bf16.mxu0 0
        %812 = vmatpush1.bf16.msra.mxu0 0
        %813 = vmatprep.subr.bf16.mxu0 0
        %814 = vmatpush1.bf16.msra.mxu0 0
        %815 = vmatprep.subr.bf16.mxu0 0
        %816 = vmatpush1.bf16.msra.mxu0 %v799
        %817 = vmatprep.subr.bf16.mxu0 0
        %818 = vmatpush2.bf16.msra.mxu0 0
        %819 = vmatprep.subr.bf16.mxu0 0
        %820 = vmatpush2.bf16.msra.mxu0 0
        %821 = vmatprep.subr.bf16.mxu0 0
        %822 = vmatpush2.bf16.msra.mxu0 0
        %823 = vmatprep.subr.bf16.mxu0 0
        %824 = vmatpush2.bf16.msra.mxu0 0
        %825 = vmatprep.subr.bf16.mxu0 0
        %826 = vmatpush2.bf16.msra.mxu0 0
        %827 = vmatprep.subr.bf16.mxu0 0
        %828 = vmatpush2.bf16.msra.mxu0 0
        %829 = vmatprep.subr.bf16.mxu0 0
        %830 = vmatpush2.bf16.msra.mxu0 0
        %831 = vmatprep.subr.bf16.mxu0 0
        %832 = vmatpush2.bf16.msra.mxu0 0
        %833 = vmatprep.mubr.bf16.mxu0 0
        %834 = vmatmul.mubr.bf16.gmra.mxu0 %v796
        %v835 = vpop.f32.mrf.mxu0
        %v836 = vadd.f32 0.0, %v835
        %v837 = vpop.f32.mrf.mxu0
        %v838 = vpop.f32.mrf.mxu0
        %v839 = vpop.f32.mrf.mxu0
        %840 = vdwg.mxu0
        %v841 = vmul.f32 %v836, %v790
        %842 = vrot.lane.b32.xlu0 %v619, 96
        %v843 = vpop.permute.xlu0 %842
        %844 = vrot.lane.b32.xlu0 %v620, 96
        %v845 = vpop.permute.xlu0 %844
        %v847 = vsel %vm622, %v843, 0
        %v850 = vsel %vm622, %v845, 0
        %852 = vmatprep.subr.bf16.mxu0 0
        %853 = vmatpush1.bf16.xpose.msra.mxu0 0
        %854 = vmatprep.subr.bf16.mxu0 0
        %855 = vmatpush1.bf16.xpose.msra.mxu0 0
        %856 = vmatprep.subr.bf16.mxu0 0
        %857 = vmatpush1.bf16.xpose.msra.mxu0 0
        %858 = vmatprep.subr.bf16.mxu0 0
        %859 = vmatpush1.bf16.xpose.msra.mxu0 0
        %860 = vmatprep.subr.bf16.mxu0 0
        %861 = vmatpush1.bf16.xpose.msra.mxu0 0
        %862 = vmatprep.subr.bf16.mxu0 0
        %863 = vmatpush1.bf16.xpose.msra.mxu0 0
        %864 = vmatprep.subr.bf16.mxu0 0
        %865 = vmatpush1.bf16.xpose.msra.mxu0 0
        %866 = vmatprep.subr.bf16.mxu0 0
        %867 = vmatpush1.bf16.xpose.msra.mxu0 %v850
        %868 = vmatprep.subr.bf16.mxu0 0
        %869 = vmatpush2.bf16.xpose.msra.mxu0 0
        %870 = vmatprep.subr.bf16.mxu0 0
        %871 = vmatpush2.bf16.xpose.msra.mxu0 0
        %872 = vmatprep.subr.bf16.mxu0 0
        %873 = vmatpush2.bf16.xpose.msra.mxu0 0
        %874 = vmatprep.subr.bf16.mxu0 0
        %875 = vmatpush2.bf16.xpose.msra.mxu0 0
        %876 = vmatprep.subr.bf16.mxu0 0
        %877 = vmatpush2.bf16.xpose.msra.mxu0 0
        %878 = vmatprep.subr.bf16.mxu0 0
        %879 = vmatpush2.bf16.xpose.msra.mxu0 0
        %880 = vmatprep.subr.bf16.mxu0 0
        %881 = vmatpush2.bf16.xpose.msra.mxu0 0
        %882 = vmatprep.subr.bf16.mxu0 0
        %883 = vmatpush2.bf16.xpose.msra.mxu0 0
        %884 = vmatprep.mubr.bf16.mxu0 0
        %885 = vmatmul.mubr.bf16.gmra.mxu0 %v847
        %v886 = vpop.f32.mrf.mxu0
        %v887 = vadd.f32 0.0, %v886
        %v888 = vpop.f32.mrf.mxu0
        %v889 = vpop.f32.mrf.mxu0
        %v890 = vpop.f32.mrf.mxu0
        %891 = vdwg.mxu0
        %v892 = vsel %vm669, %v887, -inf
        %893 = vmax.xlane.f32.xlu0 %v892
        %v894 = vpop.xlane.xlu0 %893
        %v895 = vsub.f32 %v887, %v894
        %v896 = vmul.f32 %v895, 1.442695
        %v897 = vpow.pop %v896
        %v898 = vsel %vm669, %v897, 0.0
        %899 = vadd.xlane.f32.xlu0 %v898
        %v900 = vpop.xlane.xlu0 %899
        %v901 = vrcp.pop %v900
        %v902 = vpack.c.bf16 %v897, %v897
        %903 = vrot.lane.b32.xlu0 %v621, 96
        %v904 = vpop.permute.xlu0 %903
        %v906 = vsel %vm669, %v902, 0
        %v909 = vsel %vm684, %v904, 0
        %911 = vmatprep.subr.bf16.mxu0 0
        %912 = vmatpush1.bf16.msra.mxu0 0
        %913 = vmatprep.subr.bf16.mxu0 0
        %914 = vmatpush1.bf16.msra.mxu0 0
        %915 = vmatprep.subr.bf16.mxu0 0
        %916 = vmatpush1.bf16.msra.mxu0 0
        %917 = vmatprep.subr.bf16.mxu0 0
        %918 = vmatpush1.bf16.msra.mxu0 0
        %919 = vmatprep.subr.bf16.mxu0 0
        %920 = vmatpush1.bf16.msra.mxu0 0
        %921 = vmatprep.subr.bf16.mxu0 0
        %922 = vmatpush1.bf16.msra.mxu0 0
        %923 = vmatprep.subr.bf16.mxu0 0
        %924 = vmatpush1.bf16.msra.mxu0 0
        %925 = vmatprep.subr.bf16.mxu0 0
        %926 = vmatpush1.bf16.msra.mxu0 %v909
        %927 = vmatprep.subr.bf16.mxu0 0
        %928 = vmatpush2.bf16.msra.mxu0 0
        %929 = vmatprep.subr.bf16.mxu0 0
        %930 = vmatpush2.bf16.msra.mxu0 0
        %931 = vmatprep.subr.bf16.mxu0 0
        %932 = vmatpush2.bf16.msra.mxu0 0
        %933 = vmatprep.subr.bf16.mxu0 0
        %934 = vmatpush2.bf16.msra.mxu0 0
        %935 = vmatprep.subr.bf16.mxu0 0
        %936 = vmatpush2.bf16.msra.mxu0 0
        %937 = vmatprep.subr.bf16.mxu0 0
        %938 = vmatpush2.bf16.msra.mxu0 0
        %939 = vmatprep.subr.bf16.mxu0 0
        %940 = vmatpush2.bf16.msra.mxu0 0
        %941 = vmatprep.subr.bf16.mxu0 0
        %942 = vmatpush2.bf16.msra.mxu0 0
        %943 = vmatprep.mubr.bf16.mxu0 0
        %944 = vmatmul.mubr.bf16.gmra.mxu0 %v906
        %v945 = vpop.f32.mrf.mxu0
        %v946 = vadd.f32 0.0, %v945
        %v947 = vpop.f32.mrf.mxu0
        %v948 = vpop.f32.mrf.mxu0
        %v949 = vpop.f32.mrf.mxu0
        %950 = vdwg.mxu0
        %v951 = vmul.f32 %v946, %v901
        %952 = vrot.lane.b32.xlu0 %v619, 80
        %v953 = vpop.permute.xlu0 %952
        %954 = vrot.lane.b32.xlu0 %v620, 80
        %v955 = vpop.permute.xlu0 %954
        %v957 = vsel %vm622, %v953, 0
        %v960 = vsel %vm622, %v955, 0
        %962 = vmatprep.subr.bf16.mxu0 0
        %963 = vmatpush1.bf16.xpose.msra.mxu0 0
        %964 = vmatprep.subr.bf16.mxu0 0
        %965 = vmatpush1.bf16.xpose.msra.mxu0 0
        %966 = vmatprep.subr.bf16.mxu0 0
        %967 = vmatpush1.bf16.xpose.msra.mxu0 0
        %968 = vmatprep.subr.bf16.mxu0 0
        %969 = vmatpush1.bf16.xpose.msra.mxu0 0
        %970 = vmatprep.subr.bf16.mxu0 0
        %971 = vmatpush1.bf16.xpose.msra.mxu0 0
        %972 = vmatprep.subr.bf16.mxu0 0
        %973 = vmatpush1.bf16.xpose.msra.mxu0 0
        %974 = vmatprep.subr.bf16.mxu0 0
        %975 = vmatpush1.bf16.xpose.msra.mxu0 0
        %976 = vmatprep.subr.bf16.mxu0 0
        %977 = vmatpush1.bf16.xpose.msra.mxu0 %v960
        %978 = vmatprep.subr.bf16.mxu0 0
        %979 = vmatpush2.bf16.xpose.msra.mxu0 0
        %980 = vmatprep.subr.bf16.mxu0 0
        %981 = vmatpush2.bf16.xpose.msra.mxu0 0
        %982 = vmatprep.subr.bf16.mxu0 0
        %983 = vmatpush2.bf16.xpose.msra.mxu0 0
        %984 = vmatprep.subr.bf16.mxu0 0
        %985 = vmatpush2.bf16.xpose.msra.mxu0 0
        %986 = vmatprep.subr.bf16.mxu0 0
        %987 = vmatpush2.bf16.xpose.msra.mxu0 0
        %988 = vmatprep.subr.bf16.mxu0 0
        %989 = vmatpush2.bf16.xpose.msra.mxu0 0
        %990 = vmatprep.subr.bf16.mxu0 0
        %991 = vmatpush2.bf16.xpose.msra.mxu0 0
        %992 = vmatprep.subr.bf16.mxu0 0
        %993 = vmatpush2.bf16.xpose.msra.mxu0 0
        %994 = vmatprep.mubr.bf16.mxu0 0
        %995 = vmatmul.mubr.bf16.gmra.mxu0 %v957
        %v996 = vpop.f32.mrf.mxu0
        %v997 = vadd.f32 0.0, %v996
        %v998 = vpop.f32.mrf.mxu0
        %v999 = vpop.f32.mrf.mxu0
        %v1000 = vpop.f32.mrf.mxu0
        %1001 = vdwg.mxu0
        %v1002 = vsel %vm669, %v997, -inf
        %1003 = vmax.xlane.f32.xlu0 %v1002
        %v1004 = vpop.xlane.xlu0 %1003
        %v1005 = vsub.f32 %v997, %v1004
        %v1006 = vmul.f32 %v1005, 1.442695
        %v1007 = vpow.pop %v1006
        %v1008 = vsel %vm669, %v1007, 0.0
        %1009 = vadd.xlane.f32.xlu0 %v1008
        %v1010 = vpop.xlane.xlu0 %1009
        %v1011 = vrcp.pop %v1010
        %v1012 = vpack.c.bf16 %v1007, %v1007
        %1013 = vrot.lane.b32.xlu0 %v621, 80
        %v1014 = vpop.permute.xlu0 %1013
        %v1016 = vsel %vm669, %v1012, 0
        %v1019 = vsel %vm684, %v1014, 0
        %1021 = vmatprep.subr.bf16.mxu0 0
        %1022 = vmatpush1.bf16.msra.mxu0 0
        %1023 = vmatprep.subr.bf16.mxu0 0
        %1024 = vmatpush1.bf16.msra.mxu0 0
        %1025 = vmatprep.subr.bf16.mxu0 0
        %1026 = vmatpush1.bf16.msra.mxu0 0
        %1027 = vmatprep.subr.bf16.mxu0 0
        %1028 = vmatpush1.bf16.msra.mxu0 0
        %1029 = vmatprep.subr.bf16.mxu0 0
        %1030 = vmatpush1.bf16.msra.mxu0 0
        %1031 = vmatprep.subr.bf16.mxu0 0
        %1032 = vmatpush1.bf16.msra.mxu0 0
        %1033 = vmatprep.subr.bf16.mxu0 0
        %1034 = vmatpush1.bf16.msra.mxu0 0
        %1035 = vmatprep.subr.bf16.mxu0 0
        %1036 = vmatpush1.bf16.msra.mxu0 %v1019
        %1037 = vmatprep.subr.bf16.mxu0 0
        %1038 = vmatpush2.bf16.msra.mxu0 0
        %1039 = vmatprep.subr.bf16.mxu0 0
        %1040 = vmatpush2.bf16.msra.mxu0 0
        %1041 = vmatprep.subr.bf16.mxu0 0
        %1042 = vmatpush2.bf16.msra.mxu0 0
        %1043 = vmatprep.subr.bf16.mxu0 0
        %1044 = vmatpush2.bf16.msra.mxu0 0
        %1045 = vmatprep.subr.bf16.mxu0 0
        %1046 = vmatpush2.bf16.msra.mxu0 0
        %1047 = vmatprep.subr.bf16.mxu0 0
        %1048 = vmatpush2.bf16.msra.mxu0 0
        %1049 = vmatprep.subr.bf16.mxu0 0
        %1050 = vmatpush2.bf16.msra.mxu0 0
        %1051 = vmatprep.subr.bf16.mxu0 0
        %1052 = vmatpush2.bf16.msra.mxu0 0
        %1053 = vmatprep.mubr.bf16.mxu0 0
        %1054 = vmatmul.mubr.bf16.gmra.mxu0 %v1016
        %v1055 = vpop.f32.mrf.mxu0
        %v1056 = vadd.f32 0.0, %v1055
        %v1057 = vpop.f32.mrf.mxu0
        %v1058 = vpop.f32.mrf.mxu0
        %v1059 = vpop.f32.mrf.mxu0
        %1060 = vdwg.mxu0
        %v1061 = vmul.f32 %v1056, %v1011
        %1062 = vrot.lane.b32.xlu0 %v619, 64
        %v1063 = vpop.permute.xlu0 %1062
        %1064 = vrot.lane.b32.xlu0 %v620, 64
        %v1065 = vpop.permute.xlu0 %1064
        %v1067 = vsel %vm622, %v1063, 0
        %v1070 = vsel %vm622, %v1065, 0
        %1072 = vmatprep.subr.bf16.mxu0 0
        %1073 = vmatpush1.bf16.xpose.msra.mxu0 0
        %1074 = vmatprep.subr.bf16.mxu0 0
        %1075 = vmatpush1.bf16.xpose.msra.mxu0 0
        %1076 = vmatprep.subr.bf16.mxu0 0
        %1077 = vmatpush1.bf16.xpose.msra.mxu0 0
        %1078 = vmatprep.subr.bf16.mxu0 0
        %1079 = vmatpush1.bf16.xpose.msra.mxu0 0
        %1080 = vmatprep.subr.bf16.mxu0 0
        %1081 = vmatpush1.bf16.xpose.msra.mxu0 0
        %1082 = vmatprep.subr.bf16.mxu0 0
        %1083 = vmatpush1.bf16.xpose.msra.mxu0 0
        %1084 = vmatprep.subr.bf16.mxu0 0
        %1085 = vmatpush1.bf16.xpose.msra.mxu0 0
        %1086 = vmatprep.subr.bf16.mxu0 0
        %1087 = vmatpush1.bf16.xpose.msra.mxu0 %v1070
        %1088 = vmatprep.subr.bf16.mxu0 0
        %1089 = vmatpush2.bf16.xpose.msra.mxu0 0
        %1090 = vmatprep.subr.bf16.mxu0 0
        %1091 = vmatpush2.bf16.xpose.msra.mxu0 0
        %1092 = vmatprep.subr.bf16.mxu0 0
        %1093 = vmatpush2.bf16.xpose.msra.mxu0 0
        %1094 = vmatprep.subr.bf16.mxu0 0
        %1095 = vmatpush2.bf16.xpose.msra.mxu0 0
        %1096 = vmatprep.subr.bf16.mxu0 0
        %1097 = vmatpush2.bf16.xpose.msra.mxu0 0
        %1098 = vmatprep.subr.bf16.mxu0 0
        %1099 = vmatpush2.bf16.xpose.msra.mxu0 0
        %1100 = vmatprep.subr.bf16.mxu0 0
        %1101 = vmatpush2.bf16.xpose.msra.mxu0 0
        %1102 = vmatprep.subr.bf16.mxu0 0
        %1103 = vmatpush2.bf16.xpose.msra.mxu0 0
        %1104 = vmatprep.mubr.bf16.mxu0 0
        %1105 = vmatmul.mubr.bf16.gmra.mxu0 %v1067
        %v1106 = vpop.f32.mrf.mxu0
        %v1107 = vadd.f32 0.0, %v1106
        %v1108 = vpop.f32.mrf.mxu0
        %v1109 = vpop.f32.mrf.mxu0
        %v1110 = vpop.f32.mrf.mxu0
        %1111 = vdwg.mxu0
        %v1112 = vsel %vm669, %v1107, -inf
        %1113 = vmax.xlane.f32.xlu0 %v1112
        %v1114 = vpop.xlane.xlu0 %1113
        %v1115 = vsub.f32 %v1107, %v1114
        %v1116 = vmul.f32 %v1115, 1.442695
        %v1117 = vpow.pop %v1116
        %v1118 = vsel %vm669, %v1117, 0.0
        %1119 = vadd.xlane.f32.xlu0 %v1118
        %v1120 = vpop.xlane.xlu0 %1119
        %v1121 = vrcp.pop %v1120
        %v1122 = vpack.c.bf16 %v1117, %v1117
        %1123 = vrot.lane.b32.xlu0 %v621, 64
        %v1124 = vpop.permute.xlu0 %1123
        %v1126 = vsel %vm669, %v1122, 0
        %v1129 = vsel %vm684, %v1124, 0
        %1131 = vmatprep.subr.bf16.mxu0 0
        %1132 = vmatpush1.bf16.msra.mxu0 0
        %1133 = vmatprep.subr.bf16.mxu0 0
        %1134 = vmatpush1.bf16.msra.mxu0 0
        %1135 = vmatprep.subr.bf16.mxu0 0
        %1136 = vmatpush1.bf16.msra.mxu0 0
        %1137 = vmatprep.subr.bf16.mxu0 0
        %1138 = vmatpush1.bf16.msra.mxu0 0
        %1139 = vmatprep.subr.bf16.mxu0 0
        %1140 = vmatpush1.bf16.msra.mxu0 0
        %1141 = vmatprep.subr.bf16.mxu0 0
        %1142 = vmatpush1.bf16.msra.mxu0 0
        %1143 = vmatprep.subr.bf16.mxu0 0
        %1144 = vmatpush1.bf16.msra.mxu0 0
        %1145 = vmatprep.subr.bf16.mxu0 0
        %1146 = vmatpush1.bf16.msra.mxu0 %v1129
        %1147 = vmatprep.subr.bf16.mxu0 0
        %1148 = vmatpush2.bf16.msra.mxu0 0
        %1149 = vmatprep.subr.bf16.mxu0 0
        %1150 = vmatpush2.bf16.msra.mxu0 0
        %1151 = vmatprep.subr.bf16.mxu0 0
        %1152 = vmatpush2.bf16.msra.mxu0 0
        %1153 = vmatprep.subr.bf16.mxu0 0
        %1154 = vmatpush2.bf16.msra.mxu0 0
        %1155 = vmatprep.subr.bf16.mxu0 0
        %1156 = vmatpush2.bf16.msra.mxu0 0
        %1157 = vmatprep.subr.bf16.mxu0 0
        %1158 = vmatpush2.bf16.msra.mxu0 0
        %1159 = vmatprep.subr.bf16.mxu0 0
        %1160 = vmatpush2.bf16.msra.mxu0 0
        %1161 = vmatprep.subr.bf16.mxu0 0
        %1162 = vmatpush2.bf16.msra.mxu0 0
        %1163 = vmatprep.mubr.bf16.mxu0 0
        %1164 = vmatmul.mubr.bf16.gmra.mxu0 %v1126
        %v1165 = vpop.f32.mrf.mxu0
        %v1166 = vadd.f32 0.0, %v1165
        %v1167 = vpop.f32.mrf.mxu0
        %v1168 = vpop.f32.mrf.mxu0
        %v1169 = vpop.f32.mrf.mxu0
        %1170 = vdwg.mxu0
        %v1171 = vmul.f32 %v1166, %v1121
        %1172 = vrot.lane.b32.xlu0 %v619, 48
        %v1173 = vpop.permute.xlu0 %1172
        %1174 = vrot.lane.b32.xlu0 %v620, 48
        %v1175 = vpop.permute.xlu0 %1174
        %v1177 = vsel %vm622, %v1173, 0
        %v1180 = vsel %vm622, %v1175, 0
        %1182 = vmatprep.subr.bf16.mxu0 0
        %1183 = vmatpush1.bf16.xpose.msra.mxu0 0
        %1184 = vmatprep.subr.bf16.mxu0 0
        %1185 = vmatpush1.bf16.xpose.msra.mxu0 0
        %1186 = vmatprep.subr.bf16.mxu0 0
        %1187 = vmatpush1.bf16.xpose.msra.mxu0 0
        %1188 = vmatprep.subr.bf16.mxu0 0
        %1189 = vmatpush1.bf16.xpose.msra.mxu0 0
        %1190 = vmatprep.subr.bf16.mxu0 0
        %1191 = vmatpush1.bf16.xpose.msra.mxu0 0
        %1192 = vmatprep.subr.bf16.mxu0 0
        %1193 = vmatpush1.bf16.xpose.msra.mxu0 0
        %1194 = vmatprep.subr.bf16.mxu0 0
        %1195 = vmatpush1.bf16.xpose.msra.mxu0 0
        %1196 = vmatprep.subr.bf16.mxu0 0
        %1197 = vmatpush1.bf16.xpose.msra.mxu0 %v1180
        %1198 = vmatprep.subr.bf16.mxu0 0
        %1199 = vmatpush2.bf16.xpose.msra.mxu0 0
        %1200 = vmatprep.subr.bf16.mxu0 0
        %1201 = vmatpush2.bf16.xpose.msra.mxu0 0
        %1202 = vmatprep.subr.bf16.mxu0 0
        %1203 = vmatpush2.bf16.xpose.msra.mxu0 0
        %1204 = vmatprep.subr.bf16.mxu0 0
        %1205 = vmatpush2.bf16.xpose.msra.mxu0 0
        %1206 = vmatprep.subr.bf16.mxu0 0
        %1207 = vmatpush2.bf16.xpose.msra.mxu0 0
        %1208 = vmatprep.subr.bf16.mxu0 0
        %1209 = vmatpush2.bf16.xpose.msra.mxu0 0
        %1210 = vmatprep.subr.bf16.mxu0 0
        %1211 = vmatpush2.bf16.xpose.msra.mxu0 0
        %1212 = vmatprep.subr.bf16.mxu0 0
        %1213 = vmatpush2.bf16.xpose.msra.mxu0 0
        %1214 = vmatprep.mubr.bf16.mxu0 0
        %1215 = vmatmul.mubr.bf16.gmra.mxu0 %v1177
        %v1216 = vpop.f32.mrf.mxu0
        %v1217 = vadd.f32 0.0, %v1216
        %v1218 = vpop.f32.mrf.mxu0
        %v1219 = vpop.f32.mrf.mxu0
        %v1220 = vpop.f32.mrf.mxu0
        %1221 = vdwg.mxu0
        %v1222 = vsel %vm669, %v1217, -inf
        %1223 = vmax.xlane.f32.xlu0 %v1222
        %v1224 = vpop.xlane.xlu0 %1223
        %v1225 = vsub.f32 %v1217, %v1224
        %v1226 = vmul.f32 %v1225, 1.442695
        %v1227 = vpow.pop %v1226
        %v1228 = vsel %vm669, %v1227, 0.0
        %1229 = vadd.xlane.f32.xlu0 %v1228
        %v1230 = vpop.xlane.xlu0 %1229
        %v1231 = vrcp.pop %v1230
        %v1232 = vpack.c.bf16 %v1227, %v1227
        %1233 = vrot.lane.b32.xlu0 %v621, 48
        %v1234 = vpop.permute.xlu0 %1233
        %v1236 = vsel %vm669, %v1232, 0
        %v1239 = vsel %vm684, %v1234, 0
        %1241 = vmatprep.subr.bf16.mxu0 0
        %1242 = vmatpush1.bf16.msra.mxu0 0
        %1243 = vmatprep.subr.bf16.mxu0 0
        %1244 = vmatpush1.bf16.msra.mxu0 0
        %1245 = vmatprep.subr.bf16.mxu0 0
        %1246 = vmatpush1.bf16.msra.mxu0 0
        %1247 = vmatprep.subr.bf16.mxu0 0
        %1248 = vmatpush1.bf16.msra.mxu0 0
        %1249 = vmatprep.subr.bf16.mxu0 0
        %1250 = vmatpush1.bf16.msra.mxu0 0
        %1251 = vmatprep.subr.bf16.mxu0 0
        %1252 = vmatpush1.bf16.msra.mxu0 0
        %1253 = vmatprep.subr.bf16.mxu0 0
        %1254 = vmatpush1.bf16.msra.mxu0 0
        %1255 = vmatprep.subr.bf16.mxu0 0
        %1256 = vmatpush1.bf16.msra.mxu0 %v1239
        %1257 = vmatprep.subr.bf16.mxu0 0
        %1258 = vmatpush2.bf16.msra.mxu0 0
        %1259 = vmatprep.subr.bf16.mxu0 0
        %1260 = vmatpush2.bf16.msra.mxu0 0
        %1261 = vmatprep.subr.bf16.mxu0 0
        %1262 = vmatpush2.bf16.msra.mxu0 0
        %1263 = vmatprep.subr.bf16.mxu0 0
        %1264 = vmatpush2.bf16.msra.mxu0 0
        %1265 = vmatprep.subr.bf16.mxu0 0
        %1266 = vmatpush2.bf16.msra.mxu0 0
        %1267 = vmatprep.subr.bf16.mxu0 0
        %1268 = vmatpush2.bf16.msra.mxu0 0
        %1269 = vmatprep.subr.bf16.mxu0 0
        %1270 = vmatpush2.bf16.msra.mxu0 0
        %1271 = vmatprep.subr.bf16.mxu0 0
        %1272 = vmatpush2.bf16.msra.mxu0 0
        %1273 = vmatprep.mubr.bf16.mxu0 0
        %1274 = vmatmul.mubr.bf16.gmra.mxu0 %v1236
        %v1275 = vpop.f32.mrf.mxu0
        %v1276 = vadd.f32 0.0, %v1275
        %v1277 = vpop.f32.mrf.mxu0
        %v1278 = vpop.f32.mrf.mxu0
        %v1279 = vpop.f32.mrf.mxu0
        %1280 = vdwg.mxu0
        %v1281 = vmul.f32 %v1276, %v1231
        %1282 = vrot.lane.b32.xlu0 %v619, 32
        %v1283 = vpop.permute.xlu0 %1282
        %1284 = vrot.lane.b32.xlu0 %v620, 32
        %v1285 = vpop.permute.xlu0 %1284
        %v1287 = vsel %vm622, %v1283, 0
        %v1290 = vsel %vm622, %v1285, 0
        %1292 = vmatprep.subr.bf16.mxu0 0
        %1293 = vmatpush1.bf16.xpose.msra.mxu0 0
        %1294 = vmatprep.subr.bf16.mxu0 0
        %1295 = vmatpush1.bf16.xpose.msra.mxu0 0
        %1296 = vmatprep.subr.bf16.mxu0 0
        %1297 = vmatpush1.bf16.xpose.msra.mxu0 0
        %1298 = vmatprep.subr.bf16.mxu0 0
        %1299 = vmatpush1.bf16.xpose.msra.mxu0 0
        %1300 = vmatprep.subr.bf16.mxu0 0
        %1301 = vmatpush1.bf16.xpose.msra.mxu0 0
        %1302 = vmatprep.subr.bf16.mxu0 0
        %1303 = vmatpush1.bf16.xpose.msra.mxu0 0
        %1304 = vmatprep.subr.bf16.mxu0 0
        %1305 = vmatpush1.bf16.xpose.msra.mxu0 0
        %1306 = vmatprep.subr.bf16.mxu0 0
        %1307 = vmatpush1.bf16.xpose.msra.mxu0 %v1290
        %1308 = vmatprep.subr.bf16.mxu0 0
        %1309 = vmatpush2.bf16.xpose.msra.mxu0 0
        %1310 = vmatprep.subr.bf16.mxu0 0
        %1311 = vmatpush2.bf16.xpose.msra.mxu0 0
        %1312 = vmatprep.subr.bf16.mxu0 0
        %1313 = vmatpush2.bf16.xpose.msra.mxu0 0
        %1314 = vmatprep.subr.bf16.mxu0 0
        %1315 = vmatpush2.bf16.xpose.msra.mxu0 0
        %1316 = vmatprep.subr.bf16.mxu0 0
        %1317 = vmatpush2.bf16.xpose.msra.mxu0 0
        %1318 = vmatprep.subr.bf16.mxu0 0
        %1319 = vmatpush2.bf16.xpose.msra.mxu0 0
        %1320 = vmatprep.subr.bf16.mxu0 0
        %1321 = vmatpush2.bf16.xpose.msra.mxu0 0
        %1322 = vmatprep.subr.bf16.mxu0 0
        %1323 = vmatpush2.bf16.xpose.msra.mxu0 0
        %1324 = vmatprep.mubr.bf16.mxu0 0
        %1325 = vmatmul.mubr.bf16.gmra.mxu0 %v1287
        %v1326 = vpop.f32.mrf.mxu0
        %v1327 = vadd.f32 0.0, %v1326
        %v1328 = vpop.f32.mrf.mxu0
        %v1329 = vpop.f32.mrf.mxu0
        %v1330 = vpop.f32.mrf.mxu0
        %1331 = vdwg.mxu0
        %v1332 = vsel %vm669, %v1327, -inf
        %1333 = vmax.xlane.f32.xlu0 %v1332
        %v1334 = vpop.xlane.xlu0 %1333
        %v1335 = vsub.f32 %v1327, %v1334
        %v1336 = vmul.f32 %v1335, 1.442695
        %v1337 = vpow.pop %v1336
        %v1338 = vsel %vm669, %v1337, 0.0
        %1339 = vadd.xlane.f32.xlu0 %v1338
        %v1340 = vpop.xlane.xlu0 %1339
        %v1341 = vrcp.pop %v1340
        %v1342 = vpack.c.bf16 %v1337, %v1337
        %1343 = vrot.lane.b32.xlu0 %v621, 32
        %v1344 = vpop.permute.xlu0 %1343
        %v1346 = vsel %vm669, %v1342, 0
        %v1349 = vsel %vm684, %v1344, 0
        %1351 = vmatprep.subr.bf16.mxu0 0
        %1352 = vmatpush1.bf16.msra.mxu0 0
        %1353 = vmatprep.subr.bf16.mxu0 0
        %1354 = vmatpush1.bf16.msra.mxu0 0
        %1355 = vmatprep.subr.bf16.mxu0 0
        %1356 = vmatpush1.bf16.msra.mxu0 0
        %1357 = vmatprep.subr.bf16.mxu0 0
        %1358 = vmatpush1.bf16.msra.mxu0 0
        %1359 = vmatprep.subr.bf16.mxu0 0
        %1360 = vmatpush1.bf16.msra.mxu0 0
        %1361 = vmatprep.subr.bf16.mxu0 0
        %1362 = vmatpush1.bf16.msra.mxu0 0
        %1363 = vmatprep.subr.bf16.mxu0 0
        %1364 = vmatpush1.bf16.msra.mxu0 0
        %1365 = vmatprep.subr.bf16.mxu0 0
        %1366 = vmatpush1.bf16.msra.mxu0 %v1349
        %1367 = vmatprep.subr.bf16.mxu0 0
        %1368 = vmatpush2.bf16.msra.mxu0 0
        %1369 = vmatprep.subr.bf16.mxu0 0
        %1370 = vmatpush2.bf16.msra.mxu0 0
        %1371 = vmatprep.subr.bf16.mxu0 0
        %1372 = vmatpush2.bf16.msra.mxu0 0
        %1373 = vmatprep.subr.bf16.mxu0 0
        %1374 = vmatpush2.bf16.msra.mxu0 0
        %1375 = vmatprep.subr.bf16.mxu0 0
        %1376 = vmatpush2.bf16.msra.mxu0 0
        %1377 = vmatprep.subr.bf16.mxu0 0
        %1378 = vmatpush2.bf16.msra.mxu0 0
        %1379 = vmatprep.subr.bf16.mxu0 0
        %1380 = vmatpush2.bf16.msra.mxu0 0
        %1381 = vmatprep.subr.bf16.mxu0 0
        %1382 = vmatpush2.bf16.msra.mxu0 0
        %1383 = vmatprep.mubr.bf16.mxu0 0
        %1384 = vmatmul.mubr.bf16.gmra.mxu0 %v1346
        %v1385 = vpop.f32.mrf.mxu0
        %v1386 = vadd.f32 0.0, %v1385
        %v1387 = vpop.f32.mrf.mxu0
        %v1388 = vpop.f32.mrf.mxu0
        %v1389 = vpop.f32.mrf.mxu0
        %1390 = vdwg.mxu0
        %v1391 = vmul.f32 %v1386, %v1341
        %1392 = vrot.lane.b32.xlu0 %v619, 16
        %v1393 = vpop.permute.xlu0 %1392
        %1394 = vrot.lane.b32.xlu0 %v620, 16
        %v1395 = vpop.permute.xlu0 %1394
        %v1397 = vsel %vm622, %v1393, 0
        %v1400 = vsel %vm622, %v1395, 0
        %1402 = vmatprep.subr.bf16.mxu0 0
        %1403 = vmatpush1.bf16.xpose.msra.mxu0 0
        %1404 = vmatprep.subr.bf16.mxu0 0
        %1405 = vmatpush1.bf16.xpose.msra.mxu0 0
        %1406 = vmatprep.subr.bf16.mxu0 0
        %1407 = vmatpush1.bf16.xpose.msra.mxu0 0
        %1408 = vmatprep.subr.bf16.mxu0 0
        %1409 = vmatpush1.bf16.xpose.msra.mxu0 0
        %1410 = vmatprep.subr.bf16.mxu0 0
        %1411 = vmatpush1.bf16.xpose.msra.mxu0 0
        %1412 = vmatprep.subr.bf16.mxu0 0
        %1413 = vmatpush1.bf16.xpose.msra.mxu0 0
        %1414 = vmatprep.subr.bf16.mxu0 0
        %1415 = vmatpush1.bf16.xpose.msra.mxu0 0
        %1416 = vmatprep.subr.bf16.mxu0 0
        %1417 = vmatpush1.bf16.xpose.msra.mxu0 %v1400
        %1418 = vmatprep.subr.bf16.mxu0 0
        %1419 = vmatpush2.bf16.xpose.msra.mxu0 0
        %1420 = vmatprep.subr.bf16.mxu0 0
        %1421 = vmatpush2.bf16.xpose.msra.mxu0 0
        %1422 = vmatprep.subr.bf16.mxu0 0
        %1423 = vmatpush2.bf16.xpose.msra.mxu0 0
        %1424 = vmatprep.subr.bf16.mxu0 0
        %1425 = vmatpush2.bf16.xpose.msra.mxu0 0
        %1426 = vmatprep.subr.bf16.mxu0 0
        %1427 = vmatpush2.bf16.xpose.msra.mxu0 0
        %1428 = vmatprep.subr.bf16.mxu0 0
        %1429 = vmatpush2.bf16.xpose.msra.mxu0 0
        %1430 = vmatprep.subr.bf16.mxu0 0
        %1431 = vmatpush2.bf16.xpose.msra.mxu0 0
        %1432 = vmatprep.subr.bf16.mxu0 0
        %1433 = vmatpush2.bf16.xpose.msra.mxu0 0
        %1434 = vmatprep.mubr.bf16.mxu0 0
        %1435 = vmatmul.mubr.bf16.gmra.mxu0 %v1397
        %v1436 = vpop.f32.mrf.mxu0
        %v1437 = vadd.f32 0.0, %v1436
        %v1438 = vpop.f32.mrf.mxu0
        %v1439 = vpop.f32.mrf.mxu0
        %v1440 = vpop.f32.mrf.mxu0
        %1441 = vdwg.mxu0
        %v1442 = vsel %vm669, %v1437, -inf
        %1443 = vmax.xlane.f32.xlu0 %v1442
        %v1444 = vpop.xlane.xlu0 %1443
        %v1445 = vsub.f32 %v1437, %v1444
        %v1446 = vmul.f32 %v1445, 1.442695
        %v1447 = vpow.pop %v1446
        %v1448 = vsel %vm669, %v1447, 0.0
        %1449 = vadd.xlane.f32.xlu0 %v1448
        %v1450 = vpop.xlane.xlu0 %1449
        %v1451 = vrcp.pop %v1450
        %v1452 = vpack.c.bf16 %v1447, %v1447
        %1453 = vrot.lane.b32.xlu0 %v621, 16
        %v1454 = vpop.permute.xlu0 %1453
        %v1456 = vsel %vm669, %v1452, 0
        %v1459 = vsel %vm684, %v1454, 0
        %1461 = vmatprep.subr.bf16.mxu0 0
        %1462 = vmatpush1.bf16.msra.mxu0 0
        %1463 = vmatprep.subr.bf16.mxu0 0
        %1464 = vmatpush1.bf16.msra.mxu0 0
        %1465 = vmatprep.subr.bf16.mxu0 0
        %1466 = vmatpush1.bf16.msra.mxu0 0
        %1467 = vmatprep.subr.bf16.mxu0 0
        %1468 = vmatpush1.bf16.msra.mxu0 0
        %1469 = vmatprep.subr.bf16.mxu0 0
        %1470 = vmatpush1.bf16.msra.mxu0 0
        %1471 = vmatprep.subr.bf16.mxu0 0
        %1472 = vmatpush1.bf16.msra.mxu0 0
        %1473 = vmatprep.subr.bf16.mxu0 0
        %1474 = vmatpush1.bf16.msra.mxu0 0
        %1475 = vmatprep.subr.bf16.mxu0 0
        %1476 = vmatpush1.bf16.msra.mxu0 %v1459
        %1477 = vmatprep.subr.bf16.mxu0 0
        %1478 = vmatpush2.bf16.msra.mxu0 0
        %1479 = vmatprep.subr.bf16.mxu0 0
        %1480 = vmatpush2.bf16.msra.mxu0 0
        %1481 = vmatprep.subr.bf16.mxu0 0
        %1482 = vmatpush2.bf16.msra.mxu0 0
        %1483 = vmatprep.subr.bf16.mxu0 0
        %1484 = vmatpush2.bf16.msra.mxu0 0
        %1485 = vmatprep.subr.bf16.mxu0 0
        %1486 = vmatpush2.bf16.msra.mxu0 0
        %1487 = vmatprep.subr.bf16.mxu0 0
        %1488 = vmatpush2.bf16.msra.mxu0 0
        %1489 = vmatprep.subr.bf16.mxu0 0
        %1490 = vmatpush2.bf16.msra.mxu0 0
        %1491 = vmatprep.subr.bf16.mxu0 0
        %1492 = vmatpush2.bf16.msra.mxu0 0
        %1493 = vmatprep.mubr.bf16.mxu0 0
        %1494 = vmatmul.mubr.bf16.gmra.mxu0 %v1456
        %v1495 = vpop.f32.mrf.mxu0
        %v1496 = vadd.f32 0.0, %v1495
        %v1497 = vpop.f32.mrf.mxu0
        %v1498 = vpop.f32.mrf.mxu0
        %v1499 = vpop.f32.mrf.mxu0
        %1500 = vdwg.mxu0
        %v1501 = vmul.f32 %v1496, %v1451
        %1503 = vrot.lane.b32.xlu0 %v841, 16
        %v1504 = vpop.permute.xlu0 %1503
        %1507 = vrot.lane.b32.xlu0 %v951, 32
        %v1508 = vpop.permute.xlu0 %1507
        %1511 = vrot.lane.b32.xlu0 %v1061, 48
        %v1512 = vpop.permute.xlu0 %1511
        %1515 = vrot.lane.b32.xlu0 %v1171, 64
        %v1516 = vpop.permute.xlu0 %1515
        %1519 = vrot.lane.b32.xlu0 %v1281, 80
        %v1520 = vpop.permute.xlu0 %1519
        %1523 = vrot.lane.b32.xlu0 %v1391, 96
        %v1524 = vpop.permute.xlu0 %1523
        %1527 = vrot.lane.b32.xlu0 %v1501, 112
        %v1528 = vpop.permute.xlu0 %1527
        %v1530 = vsel %vm622, %v728, %v1504
        %v1531 = vsel %vm441, %v1530, %v1508
        %vm1532 = vcmask 392192
        %v1533 = vsel %vm1532, %v1531, %v1512
        %vm1534 = vcmask 523264
        %v1535 = vsel %vm1534, %v1533, %v1516
        %vm1536 = vcmask 654336
        %v1537 = vsel %vm1536, %v1535, %v1520
        %vm1538 = vcmask 785408
        %v1539 = vsel %vm1538, %v1537, %v1524
        %vm1540 = vcmask 916480
        %v1541 = vsel %vm1540, %v1539, %v1528
        %v1542 = vpack.c.bf16 %v1541, %v1541
        %v1543 = vld [vmem:[%s9] sm:$0xf]
        %v1544 = vld [vmem:[%s9 + $0x4] sm:$0xf]
        %v1545 = vld [vmem:[%s9 + $0x8] sm:$0xf]
        %v1546 = vld [vmem:[%s9 + $0xc] sm:$0xf]
        %v1547 = vld [vmem:[%s9 + $0x10] sm:$0xf]
        %v1548 = vld [vmem:[%s9 + $0x14] sm:$0xf]
        %v1549 = vld [vmem:[%s9 + $0x18] sm:$0xf]
        %v1550 = vld [vmem:[%s9 + $0x1c] sm:$0xf]
        %v1551 = vld [vmem:[%s9 + $0x20] sm:$0xf]
        %v1552 = vld [vmem:[%s9 + $0x24] sm:$0xf]
        %v1553 = vld [vmem:[%s9 + $0x28] sm:$0xf]
        %v1554 = vld [vmem:[%s9 + $0x2c] sm:$0xf]
        %v1555 = vld [vmem:[%s9 + $0x30] sm:$0xf]
        %v1556 = vld [vmem:[%s9 + $0x34] sm:$0xf]
        %v1557 = vld [vmem:[%s9 + $0x38] sm:$0xf]
        %v1558 = vld [vmem:[%s9 + $0x3c] sm:$0xf]
        %v1559 = vld [vmem:[%s10] sm:$0x1]
        %v1561 = vlaneseq
        %v1562 = vshrl.u32 %v1561, 7
        %v1563 = vsub.s32 0, %v1562
        %v1564 = vrot.slane %v1559, %v1563
        %v1582 = vunpack.c.l.b16 %v1543
        %v1583 = vunpack.c.l.b16 %v1544
        %v1584 = vunpack.c.l.b16 %v1545
        %v1585 = vunpack.c.l.b16 %v1546
        %v1586 = vunpack.c.l.b16 %v1547
        %v1587 = vunpack.c.l.b16 %v1548
        %v1588 = vunpack.c.l.b16 %v1549
        %v1589 = vunpack.c.l.b16 %v1550
        %v1590 = vunpack.c.l.b16 %v1551
        %v1591 = vunpack.c.l.b16 %v1552
        %v1592 = vunpack.c.l.b16 %v1553
        %v1593 = vunpack.c.l.b16 %v1554
        %v1594 = vunpack.c.l.b16 %v1555
        %v1595 = vunpack.c.l.b16 %v1556
        %v1596 = vunpack.c.l.b16 %v1557
        %v1597 = vunpack.c.l.b16 %v1558
        %v1598 = vpack.c.b16 %v1583, %v1582
        %v1599 = vpack.c.b16 %v1585, %v1584
        %v1600 = vpack.c.b16 %v1587, %v1586
        %v1601 = vpack.c.b16 %v1589, %v1588
        %v1602 = vpack.c.b16 %v1591, %v1590
        %v1603 = vpack.c.b16 %v1593, %v1592
        %v1604 = vpack.c.b16 %v1595, %v1594
        %v1605 = vpack.c.b16 %v1597, %v1596
        %1614 = vmatprep.subr.bf16.mxu0 0
        %1615 = vmatpush1.bf16.msra.mxu0 %v1605
        %1616 = vmatprep.subr.bf16.mxu0 0
        %1617 = vmatpush1.bf16.msra.mxu0 %v1604
        %1618 = vmatprep.subr.bf16.mxu0 0
        %1619 = vmatpush1.bf16.msra.mxu0 %v1603
        %1620 = vmatprep.subr.bf16.mxu0 0
        %1621 = vmatpush1.bf16.msra.mxu0 %v1602
        %1622 = vmatprep.subr.bf16.mxu0 0
        %1623 = vmatpush1.bf16.msra.mxu0 %v1601
        %1624 = vmatprep.subr.bf16.mxu0 0
        %1625 = vmatpush1.bf16.msra.mxu0 %v1600
        %1626 = vmatprep.subr.bf16.mxu0 0
        %1627 = vmatpush1.bf16.msra.mxu0 %v1599
        %1628 = vmatprep.subr.bf16.mxu0 0
        %1629 = vmatpush1.bf16.msra.mxu0 %v1598
        %1630 = vmatprep.subr.bf16.mxu0 0
        %1631 = vmatpush2.bf16.msra.mxu0 0
        %1632 = vmatprep.subr.bf16.mxu0 0
        %1633 = vmatpush2.bf16.msra.mxu0 0
        %1634 = vmatprep.subr.bf16.mxu0 0
        %1635 = vmatpush2.bf16.msra.mxu0 0
        %1636 = vmatprep.subr.bf16.mxu0 0
        %1637 = vmatpush2.bf16.msra.mxu0 0
        %1638 = vmatprep.subr.bf16.mxu0 0
        %1639 = vmatpush2.bf16.msra.mxu0 0
        %1640 = vmatprep.subr.bf16.mxu0 0
        %1641 = vmatpush2.bf16.msra.mxu0 0
        %1642 = vmatprep.subr.bf16.mxu0 0
        %1643 = vmatpush2.bf16.msra.mxu0 0
        %1644 = vmatprep.subr.bf16.mxu0 0
        %1645 = vmatpush2.bf16.msra.mxu0 0
        %1646 = vmatprep.mubr.bf16.mxu0 0
        %1647 = vmatmul.mubr.bf16.gmra.mxu0 %v1542
        %v1648 = vpop.f32.mrf.mxu0
        %v1649 = vadd.f32 %v1564, %v1648
        %v1650 = vpop.f32.mrf.mxu0
        %v1651 = vpop.f32.mrf.mxu0
        %v1652 = vpop.f32.mrf.mxu0
        %1653 = vdwg.mxu0
        %1654 = vst.msk [vmem:[%s403] sm:$0xff] %vm441, %v1649
        %s1655 = sand.u32 %s279, 1
        %s1656 = scalar_lea.sflag [#allocation3], %s1655
        %s1657 = sand.u32 %s279, 1
        %s1658 = smul.addr %s1657, 8
        %s1659 = scalar_lea.vmem [#allocation2], %s1658
        // Predicated region
        $region65: #{cattention.1} parent=63 // pred_check
          %p1660 = pneg %p289
        $region66: #{cattention.1} parent=63 // pred_check_branch
          %1662 = sbr.rel (%p1660) target = $region68
        $region67: #{cattention.1} parent=63 // pred_region
          %s1664 = ssub.s32 128, 128
          %1665 = vsyncadd %s1656, %s1664
          %s1666 = smul.addr %s25, 128
          %s1667 = scalar_lea.hbm %s11, %s1666
          %s1669 = sshll.u32 %s1659, 4
          %s1670 = int_to_ptr.vmem [resolvable:$true] %s1669
          %1672 = dma.vmem_to_hbm [thread:$0]  %s1670, 128, %s1667, %s1656
        $region68: #{cattention.1} parent=63 // pred_fallthru
          _
      $region64: #{cattention.1} parent=5 // pred_fallthru
        _
      %p1673 = scmp.le.s32.totalorder 2, %s20
      // Predicated region
      $region69: #{cattention.1} parent=5 // pred_check
        %p1674 = pneg %p1673
      $region70: #{cattention.1} parent=5 // pred_check_branch
        %1676 = sbr.rel (%p1674) target = $region72
      $region71: #{cattention.1} parent=5 // pred_region
        %s1677 = ssub.s32 %s20, 2
        // Predicated region
        $region73: #{cattention.1} parent=71 // pred_check
          %p1678 = pneg %p295
        $region74: #{cattention.1} parent=71 // pred_check_branch
          %1680 = sbr.rel (%p1678) target = $region76
        $region75: #{cattention.1} parent=71 // pred_region
          %s1681 = sand.u32 %s280, 1
          %s1682 = scalar_lea.sflag [#allocation3], %s1681
          %s1683 = sand.u32 %s280, 1
          %s1684 = smul.addr %s1683, 8
          %s1685 = scalar_lea.vmem [#allocation2], %s1684
          %1686 = dma.done %s1682, 128
        $region76: #{cattention.1} parent=71 // pred_fallthru
          _
      $region72: #{cattention.1} parent=5 // pred_fallthru
        _
    $region6: #{cattention.1} parent=1 // loop_footer
      %s24 = sadd.s32 1, %s20
    $region7: #{cattention.1} parent=1 // loop_footer_branch
      %19 = sbr.rel target = $region3
    $region8: #{cattention.1} parent=1 // loop_exit
      _
    %1687 = vsyncpa [#allocation3], 1
    %s1688 = scalar_lea.sflag [#allocation3], 1
    %1689 = vsyncpa %s1688, 1

</llo_original>
